<compile_context>
chip_gen: v5e
topology: v5e:2x2
jax: 0.10.0
libtpu: 0.0.40
codegen_flags: <defaults>
</compile_context>

<pallas_src>
import functools

import jax
import jax.numpy as jnp
from jax.experimental import pallas as pl
from jax.experimental.pallas import tpu as pltpu

MXU_DTYPE = jnp.bfloat16  # matmul operand dtype (f32 accumulation everywhere)


# ----------------------------------------------------------------------------
# Fused ResidualGroup kernel: one grid step = one RCAB (b < n_resblocks)
# or the tail conv + outer residual (b == n_resblocks).
# ----------------------------------------------------------------------------
def _group_kernel(xp_ref, wa_ref, ba_ref, wb_ref, bb_ref,
                  w1_ref, b1_ref, w2_ref, b2_ref,
                  o_ref,
                  pad_ref, col_ref, skip_ref,
                  *, H, W, C, n_resblocks, col_dtype):
    # Channel-major: activations are (C, spatial) with spatial on the lane axis.
    # pad_ref holds the current activation as a row-padded flat image of (H+2) rows of
    # width (W+2) plus 2 spare zero lanes, so im2col tap (dy, dx) of output column j is
    # simply pad[:, j + dy*(W+2) + dx].  Columns with (j % (W+2)) >= W are gutter columns
    # (garbage, discarded); the mask keeps the zero halo intact and the avg-pool exact.
    b = pl.program_id(1)
    Wp = W + 2
    M = H * Wp                       # matmul N dim (row-padded spatial)
    base = Wp + 1                    # flat offset of padded pixel (1, 1)

    lane = jax.lax.broadcasted_iota(jnp.int32, (1, M), 1)
    validf = ((lane % Wp) < W).astype(jnp.float32)   # 1.0 on real pixels, 0.0 on gutters

    @pl.when(b == 0)
    def _init():
        # Group input arrives already zero-padded (halo + spare lanes) from the wrapper,
        # so no extra zeroing of pad_ref is needed.
        pad_ref[...] = xp_ref[0].astype(jnp.float32)

    def conv3x3(w_ref, b_ref):
        # im2col: 9 contiguous lane slices of the padded activation (no reshapes).
        for k in range(9):
            dy, dx = k // 3, k % 3
            sh = dy * Wp + dx
            col_ref[k * C:(k + 1) * C, :] = pad_ref[:, sh:sh + M].astype(col_dtype)
        col = col_ref[...]
        if col_dtype != MXU_DTYPE:
            col = col.astype(MXU_DTYPE)
        # Single fat, lane-dense MXU contraction: (C, 9C) x (9C, M) -> (C, M) f32.
        acc = jnp.dot(w_ref[0], col, preferred_element_type=jnp.float32)
        return acc + b_ref[0].astype(jnp.float32)    # bias (C, 1) broadcasts over lanes

    @pl.when(b < n_resblocks)
    def _rcab():
        # Stash the block input; it is read back only at the residual add.
        skip_ref[...] = pad_ref[:, base:base + M]
        h = jnp.maximum(conv3x3(wa_ref, ba_ref), 0.0)          # conv A + ReLU
        # Feed conv B: overwrite the interior; masking keeps the zero halo intact.
        pad_ref[:, base:base + M] = h * validf
        h = conv3x3(wb_ref, bb_ref)                            # conv B
        # CALayer on VPU/XLU (no MXU): masked global average pool over real pixels.
        y = jnp.sum(h * validf, axis=1, keepdims=True) * (1.0 / (H * W))    # (C, 1)
        z = jnp.sum(w1_ref[0] * y, axis=0, keepdims=True) + b1_ref[0]       # (1, Cr)
        z = jnp.maximum(z, 0.0)
        z = jnp.sum(w2_ref[0] * z, axis=1, keepdims=True) + b2_ref[0]       # (C, 1)
        s = jax.nn.sigmoid(z)
        out = h * s + skip_ref[...]                            # RCAB residual
        pad_ref[:, base:base + M] = out * validf               # next block's input

    @pl.when(b == n_resblocks)
    def _tail():
        h = conv3x3(wa_ref, ba_ref)                            # tail conv (last weight slot)
        x0 = xp_ref[0][:, base:base + M]                       # group input, read late
        o_ref[0] = ((h + x0.astype(jnp.float32)) * validf).astype(o_ref.dtype)


# ----------------------------------------------------------------------------
# pallas_call wrapper
# ----------------------------------------------------------------------------
def _vmem_limit_bytes(C, Cr, H, W, col_bytes):
    Wp = W + 2
    M = H * Wp
    P = (H + 2) * Wp + 2
    f32 = 4
    io_blocks = C * P * f32 + C * M * f32                      # x_pad block + out block
    w_blocks = (2 * C * 9 * C * 2 + 2 * C * f32                # wa/wb (bf16) + ba/bb
                + 2 * C * Cr * f32 + Cr * f32 + C * f32)       # CA weights / biases
    scratch = C * P * f32 + 9 * C * M * col_bytes + C * M * f32
    est = 2 * (io_blocks + w_blocks) + scratch                 # 2x: double buffering
    return int(min(max(2 * est, 16 * 2**20), 48 * 2**20))      # cap well under v7x 64 MiB


def residual_group_forward(x_nchw, prepared):
    """PyTorch-semantics ResidualGroup.  x: (N, C, H, W) -> (N, C, H, W)."""
    N, C, H, W = x_nchw.shape
    Wp = W + 2
    M = H * Wp
    P = (H + 2) * Wp + 2
    NB = prepared["wa"].shape[0]                 # n_resblocks + 1 (tail conv = last slot)
    n_resblocks = NB - 1
    Cr = prepared["w1"].shape[-1]

    # NCHW is already channel-major -> no transposes.  Pad the spatial halo once per group
    # call (cheap XLA op), flatten rows, and add 2 spare zero lanes so the last im2col
    # tap's slice stays in bounds.
    xp = jnp.pad(x_nchw.astype(jnp.float32), ((0, 0), (0, 0), (1, 1), (1, 1)))
    xp = jnp.pad(xp.reshape(N, C, (H + 2) * Wp), ((0, 0), (0, 0), (0, 2)))   # (N, C, P)

    # bf16 im2col halves scratch + store traffic, but bf16 sublane tiles are 16 rows; when
    # C % 16 != 0 the per-tap row writes would be tile-misaligned, so fall back to f32.
    col_dtype = MXU_DTYPE if C % 16 == 0 else jnp.float32
    col_bytes = 2 if col_dtype == MXU_DTYPE else 4

    kernel = functools.partial(_group_kernel, H=H, W=W, C=C,
                               n_resblocks=n_resblocks, col_dtype=col_dtype)
    blk_w = lambda n, b: (b, 0, 0)               # per-block weights (prefetched over b)
    blk_x = lambda n, b: (n, 0, 0)               # per-image blocks (resident across b)

    out_pad = pl.pallas_call(
        kernel,
        out_shape=jax.ShapeDtypeStruct((N, C, M), x_nchw.dtype),
        grid=(N, NB),
        in_specs=[
            pl.BlockSpec((1, C, P), blk_x),      # padded group input
            pl.BlockSpec((1, C, 9 * C), blk_w),  # conv A / tail weights (channel-major)
            pl.BlockSpec((1, C, 1), blk_w),      # conv A / tail bias
            pl.BlockSpec((1, C, 9 * C), blk_w),  # conv B weights
            pl.BlockSpec((1, C, 1), blk_w),      # conv B bias
            pl.BlockSpec((1, C, Cr), blk_w),     # CA squeeze weight
            pl.BlockSpec((1, 1, Cr), blk_w),     # CA squeeze bias
            pl.BlockSpec((1, C, Cr), blk_w),     # CA excite weight (pre-transposed)
            pl.BlockSpec((1, C, 1), blk_w),      # CA excite bias
        ],
        out_specs=pl.BlockSpec((1, C, M), blk_x),
        scratch_shapes=[
            pltpu.VMEM((C, P), jnp.float32),     # resident padded activation
            pltpu.VMEM((9 * C, M), col_dtype),   # im2col buffer
            pltpu.VMEM((C, M), jnp.float32),     # RCAB residual stash
        ],
        compiler_params=pltpu.CompilerParams(
            dimension_semantics=("parallel", "arbitrary"),
            vmem_limit_bytes=_vmem_limit_bytes(C, Cr, H, W, col_bytes)),
    )(xp, prepared["wa"], prepared["ba"], prepared["wb"], prepared["bb"],
      prepared["w1"], prepared["b1"], prepared["w2"], prepared["b2"])

    # Drop the 2 gutter columns per row -> (N, C, H, W).
    return out_pad.reshape(N, C, H, Wp)[:, :, :, :W]


# ----------------------------------------------------------------------------
# Parameter construction / preparation (done once, outside the hot path)
# ----------------------------------------------------------------------------
def make_params(key, n_feat, reduction, n_resblocks, dtype=jnp.float32):
    """Random parameters in HWIO conv layout.

    NOTE: real PyTorch Conv2d weights are OIHW; transpose with (2, 3, 1, 0) to HWIO
    before prepare_group_params when importing a checkpoint.
    """
    Cr = max(n_feat // reduction, 1)
    scale = 0.05

    def nrm(k, shape):
        return (scale * jax.random.normal(k, shape)).astype(dtype)

    keys = iter(jax.random.split(key, n_resblocks * 8 + 2))
    blocks = []
    for _ in range(n_resblocks):
        blocks.append(dict(
            w_a=nrm(next(keys), (3, 3, n_feat, n_feat)),
            b_a=nrm(next(keys), (n_feat,)),
            w_b=nrm(next(keys), (3, 3, n_feat, n_feat)),
            b_b=nrm(next(keys), (n_feat,)),
            ca_w1=nrm(next(keys), (n_feat, Cr)),
            ca_b1=nrm(next(keys), (Cr,)),
            ca_w2=nrm(next(keys), (Cr, n_feat)),
            ca_b2=nrm(next(keys), (n_feat,)),
        ))
    return dict(blocks=blocks,
                w_tail=nrm(next(keys), (3, 3, n_feat, n_feat)),
                b_tail=nrm(next(keys), (n_feat,)))


def prepare_group_params(params, mxu_dtype=MXU_DTYPE):
    """Stack per-block weights along a leading block axis (tail conv = last slot).

    Conv weights go to channel-major (Cout, 9*Cin) bf16 so the in-kernel conv is a single
    lane-dense MXU contraction; all epilogue params stay f32.
    """
    C = params["w_tail"].shape[-1]
    Cr = params["blocks"][0]["ca_w1"].shape[-1]

    def prep_w(w):                              # HWIO (3,3,Ci,Co) -> (Co, 9*Ci)
        kh, kw, ci, co = w.shape
        return w.reshape(kh * kw * ci, co).T.astype(mxu_dtype)

    wa, ba, wb, bb, w1, b1, w2, b2 = ([] for _ in range(8))
    for blk in params["blocks"]:
        wa.append(prep_w(blk["w_a"]))
        ba.append(blk["b_a"].reshape(C, 1).astype(jnp.float32))
        wb.append(prep_w(blk["w_b"]))
        bb.append(blk["b_b"].reshape(C, 1).astype(jnp.float32))
        w1.append(blk["ca_w1"].astype(jnp.float32))                  # (C, Cr)
        b1.append(blk["ca_b1"].reshape(1, Cr).astype(jnp.float32))
        w2.append(blk["ca_w2"].T.astype(jnp.float32))                # (Cr, C) -> (C, Cr)
        b2.append(blk["ca_b2"].reshape(C, 1).astype(jnp.float32))
    # Tail conv occupies the last block slot; its unused operands are zeros.
    wa.append(prep_w(params["w_tail"]))
    ba.append(params["b_tail"].reshape(C, 1).astype(jnp.float32))
    wb.append(jnp.zeros((C, 9 * C), mxu_dtype))
    bb.append(jnp.zeros((C, 1), jnp.float32))
    w1.append(jnp.zeros((C, Cr), jnp.float32))
    b1.append(jnp.zeros((1, Cr), jnp.float32))
    w2.append(jnp.zeros((C, Cr), jnp.float32))
    b2.append(jnp.zeros((C, 1), jnp.float32))
    return dict(wa=jnp.stack(wa), ba=jnp.stack(ba), wb=jnp.stack(wb), bb=jnp.stack(bb),
                w1=jnp.stack(w1), b1=jnp.stack(b1), w2=jnp.stack(w2), b2=jnp.stack(b2))


# ----------------------------------------------------------------------------
# Pure-JAX reference (f32) for a tolerance check
# ----------------------------------------------------------------------------
def _reference_forward(x, params):
    def conv3x3(v, w, b):
        out = jax.lax.conv_general_dilated(
            v, w, window_strides=(1, 1), padding="SAME",
            dimension_numbers=("NCHW", "HWIO", "NCHW"))
        return out + b.reshape(1, -1, 1, 1)

    res = x
    for blk in params["blocks"]:
        h = jax.nn.relu(conv3x3(res, blk["w_a"], blk["b_a"]))
        h = conv3x3(h, blk["w_b"], blk["b_b"])
        y = jnp.mean(h, axis=(2, 3), keepdims=True)
        z = jnp.einsum("ncij,cr->nrij", y, blk["ca_w1"]) + blk["ca_b1"].reshape(1, -1, 1, 1)
        z = jax.nn.relu(z)
        z = jnp.einsum("nrij,rc->ncij", z, blk["ca_w2"]) + blk["ca_b2"].reshape(1, -1, 1, 1)
        res = h * jax.nn.sigmoid(z) + res
    return conv3x3(res, params["w_tail"], params["b_tail"]) + x


if __name__ == "__main__":
    key = jax.random.PRNGKey(0)
    k_x, k_p = jax.random.split(key)

    N, n_feat, H, W = 2, 8, 16, 16
    reduction = 4
    n_resblocks = 2

    x = jax.random.normal(k_x, (N, n_feat, H, W), dtype=jnp.float32)   # NCHW like PyTorch
    params = make_params(k_p, n_feat, reduction, n_resblocks)
    prepared = prepare_group_params(params)

    fwd = jax.jit(residual_group_forward)
    out = jax.block_until_ready(fwd(x, prepared))

    assert out.shape == (N, n_feat, H, W)
    assert out.dtype == jnp.float32
    assert bool(jnp.all(jnp.isfinite(out)))

    ref = _reference_forward(x, params)
    max_err = float(jnp.max(jnp.abs(out - ref)))
    assert bool(jnp.allclose(out, ref, atol=3e-2, rtol=3e-2)), max_err   # bf16 matmul tol

    print("KERNEL_OK")
</pallas_src>

<mosaic_0001>
module attributes {stable_mosaic.version = 11 : i64} {
  func.func @_group_kernel(%arg0: i32, %arg1: i32, %arg2: memref<1x8x326xf32, #tpu.memory_space<vmem>>, %arg3: memref<1x8x72xbf16, #tpu.memory_space<vmem>>, %arg4: memref<1x8x1xf32, #tpu.memory_space<vmem>>, %arg5: memref<1x8x72xbf16, #tpu.memory_space<vmem>>, %arg6: memref<1x8x1xf32, #tpu.memory_space<vmem>>, %arg7: memref<1x8x2xf32, #tpu.memory_space<vmem>>, %arg8: memref<1x1x2xf32, #tpu.memory_space<vmem>>, %arg9: memref<1x8x2xf32, #tpu.memory_space<vmem>>, %arg10: memref<1x8x1xf32, #tpu.memory_space<vmem>>, %arg11: memref<1x8x288xf32, #tpu.memory_space<vmem>>, %arg12: memref<8x326xf32, #tpu.memory_space<vmem>>, %arg13: memref<72x288xf32, #tpu.memory_space<vmem>>, %arg14: memref<8x288xf32, #tpu.memory_space<vmem>>) attributes {dimension_semantics = [#tpu.dimension_semantics<parallel>, #tpu.dimension_semantics<arbitrary>], iteration_bounds = array<i64: 2, 3>, scalar_prefetch = 0 : i64, scratch_operands = 3 : i64, tpu.core_type = #tpu.core_type<tc>, window_params = [{transform_indices = @transform_0, window_bounds = array<i64: 1, 8, 326>}, {transform_indices = @transform_1, window_bounds = array<i64: 1, 8, 72>}, {transform_indices = @transform_2, window_bounds = array<i64: 1, 8, 1>}, {transform_indices = @transform_3, window_bounds = array<i64: 1, 8, 72>}, {transform_indices = @transform_4, window_bounds = array<i64: 1, 8, 1>}, {transform_indices = @transform_5, window_bounds = array<i64: 1, 8, 2>}, {transform_indices = @transform_6, window_bounds = array<i64: 1, 1, 2>}, {transform_indices = @transform_7, window_bounds = array<i64: 1, 8, 2>}, {transform_indices = @transform_8, window_bounds = array<i64: 1, 8, 1>}, {transform_indices = @transform_9, window_bounds = array<i64: 1, 8, 288>}]} {
    %0 = tpu.iota {dimensions = array<i32: 1>} : vector<1x288xi32>
    %c18_i32 = arith.constant 18 : i32
    %c0_i32 = arith.constant 0 : i32
    %1 = arith.cmpi eq, %c18_i32, %c0_i32 : i32
    %c1_i32 = arith.constant 1 : i32
    %2 = arith.select %1, %c1_i32, %c18_i32 : i32
    %3 = vector.broadcast %2 : i32 to vector<1x288xi32>
    %4 = arith.remsi %0, %3 : vector<1x288xi32>
    %c0_i32_0 = arith.constant 0 : i32
    %5 = vector.broadcast %c0_i32_0 : i32 to vector<1x288xi32>
    %6 = arith.cmpi ne, %4, %5 : vector<1x288xi32>
    %c0_i32_1 = arith.constant 0 : i32
    %7 = vector.broadcast %c0_i32_1 : i32 to vector<1x288xi32>
    %8 = arith.cmpi slt, %4, %7 : vector<1x288xi32>
    %c0_i32_2 = arith.constant 0 : i32
    %9 = arith.cmpi slt, %2, %c0_i32_2 : i32
    %10 = vector.broadcast %9 : i1 to vector<1x288xi1>
    %11 = vector.broadcast %10 : vector<1x288xi1> to vector<1x288xi1>
    %12 = arith.xori %8, %11 : vector<1x288xi1>
    %13 = arith.andi %12, %6 : vector<1x288xi1>
    %14 = vector.broadcast %2 : i32 to vector<1x288xi32>
    %15 = arith.addi %4, %14 : vector<1x288xi32>
    %16 = arith.select %13, %15, %4 : vector<1x288xi1>, vector<1x288xi32>
    %c16_i32 = arith.constant 16 : i32
    %17 = vector.broadcast %c16_i32 : i32 to vector<1x288xi32>
    %18 = arith.cmpi slt, %16, %17 : vector<1x288xi32>
    %19 = arith.extui %18 : vector<1x288xi1> to vector<1x288xi32>
    %20 = arith.sitofp %19 : vector<1x288xi32> to vector<1x288xf32>
    %c0_i32_3 = arith.constant 0 : i32
    %21 = arith.cmpi eq, %arg1, %c0_i32_3 : i32
    %22 = arith.extui %21 : i1 to i32
    %c0_i32_4 = arith.constant 0 : i32
    %23 = arith.cmpi ne, %22, %c0_i32_4 : i32
    scf.if %23 {
      %c0 = arith.constant 0 : index
      %c0_8 = arith.constant 0 : index
      %c0_9 = arith.constant 0 : index
      %30 = vector.load %arg2[%c0, %c0_8, %c0_9] : memref<1x8x326xf32, #tpu.memory_space<vmem>>, vector<1x8x326xf32>
      %31 = vector.shape_cast %30 : vector<1x8x326xf32> to vector<8x326xf32>
      %c0_10 = arith.constant 0 : index
      %c0_11 = arith.constant 0 : index
      %32 = vector.load %arg12[%c0_10, %c0_11] : memref<8x326xf32, #tpu.memory_space<vmem>>, vector<8x326xf32>
      tpu.vector_store %arg12[%c0_10, %c0_11], %31 {strides = array<i32>} : memref<8x326xf32, #tpu.memory_space<vmem>>, vector<8x326xf32>,
    } else {
    }
    %c2_i32 = arith.constant 2 : i32
    %24 = arith.cmpi slt, %arg1, %c2_i32 : i32
    %25 = arith.extui %24 : i1 to i32
    %c0_i32_5 = arith.constant 0 : i32
    %26 = arith.cmpi ne, %25, %c0_i32_5 : i32
    scf.if %26 {
      %c0 = arith.constant 0 : index
      %c19 = arith.constant 19 : index
      %30 = vector.load %arg12[%c0, %c19] : memref<8x326xf32, #tpu.memory_space<vmem>>, vector<8x288xf32>
      %c0_8 = arith.constant 0 : index
      %c0_9 = arith.constant 0 : index
      %31 = vector.load %arg14[%c0_8, %c0_9] : memref<8x288xf32, #tpu.memory_space<vmem>>, vector<8x288xf32>
      tpu.vector_store %arg14[%c0_8, %c0_9], %30 {strides = array<i32>} : memref<8x288xf32, #tpu.memory_space<vmem>>, vector<8x288xf32>,
      %c0_10 = arith.constant 0 : index
      %c0_11 = arith.constant 0 : index
      %32 = vector.load %arg12[%c0_10, %c0_11] : memref<8x326xf32, #tpu.memory_space<vmem>>, vector<8x288xf32>
      %c0_12 = arith.constant 0 : index
      %c0_13 = arith.constant 0 : index
      %33 = vector.load %arg13[%c0_12, %c0_13] : memref<72x288xf32, #tpu.memory_space<vmem>>, vector<8x288xf32>
      tpu.vector_store %arg13[%c0_12, %c0_13], %32 {strides = array<i32>} : memref<72x288xf32, #tpu.memory_space<vmem>>, vector<8x288xf32>,
      %c0_14 = arith.constant 0 : index
      %c1 = arith.constant 1 : index
      %34 = vector.load %arg12[%c0_14, %c1] : memref<8x326xf32, #tpu.memory_space<vmem>>, vector<8x288xf32>
      %c8 = arith.constant 8 : index
      %c0_15 = arith.constant 0 : index
      %35 = vector.load %arg13[%c8, %c0_15] : memref<72x288xf32, #tpu.memory_space<vmem>>, vector<8x288xf32>
      tpu.vector_store %arg13[%c8, %c0_15], %34 {strides = array<i32>} : memref<72x288xf32, #tpu.memory_space<vmem>>, vector<8x288xf32>,
      %c0_16 = arith.constant 0 : index
      %c2 = arith.constant 2 : index
      %36 = vector.load %arg12[%c0_16, %c2] : memref<8x326xf32, #tpu.memory_space<vmem>>, vector<8x288xf32>
      %c16 = arith.constant 16 : index
      %c0_17 = arith.constant 0 : index
      %37 = vector.load %arg13[%c16, %c0_17] : memref<72x288xf32, #tpu.memory_space<vmem>>, vector<8x288xf32>
      tpu.vector_store %arg13[%c16, %c0_17], %36 {strides = array<i32>} : memref<72x288xf32, #tpu.memory_space<vmem>>, vector<8x288xf32>,
      %c0_18 = arith.constant 0 : index
      %c18 = arith.constant 18 : index
      %38 = vector.load %arg12[%c0_18, %c18] : memref<8x326xf32, #tpu.memory_space<vmem>>, vector<8x288xf32>
      %c24 = arith.constant 24 : index
      %c0_19 = arith.constant 0 : index
      %39 = vector.load %arg13[%c24, %c0_19] : memref<72x288xf32, #tpu.memory_space<vmem>>, vector<8x288xf32>
      tpu.vector_store %arg13[%c24, %c0_19], %38 {strides = array<i32>} : memref<72x288xf32, #tpu.memory_space<vmem>>, vector<8x288xf32>,
      %c0_20 = arith.constant 0 : index
      %c19_21 = arith.constant 19 : index
      %40 = vector.load %arg12[%c0_20, %c19_21] : memref<8x326xf32, #tpu.memory_space<vmem>>, vector<8x288xf32>
      %c32 = arith.constant 32 : index
      %c0_22 = arith.constant 0 : index
      %41 = vector.load %arg13[%c32, %c0_22] : memref<72x288xf32, #tpu.memory_space<vmem>>, vector<8x288xf32>
      tpu.vector_store %arg13[%c32, %c0_22], %40 {strides = array<i32>} : memref<72x288xf32, #tpu.memory_space<vmem>>, vector<8x288xf32>,
      %c0_23 = arith.constant 0 : index
      %c20 = arith.constant 20 : index
      %42 = vector.load %arg12[%c0_23, %c20] : memref<8x326xf32, #tpu.memory_space<vmem>>, vector<8x288xf32>
      %c40 = arith.constant 40 : index
      %c0_24 = arith.constant 0 : index
      %43 = vector.load %arg13[%c40, %c0_24] : memref<72x288xf32, #tpu.memory_space<vmem>>, vector<8x288xf32>
      tpu.vector_store %arg13[%c40, %c0_24], %42 {strides = array<i32>} : memref<72x288xf32, #tpu.memory_space<vmem>>, vector<8x288xf32>,
      %c0_25 = arith.constant 0 : index
      %c36 = arith.constant 36 : index
      %44 = vector.load %arg12[%c0_25, %c36] : memref<8x326xf32, #tpu.memory_space<vmem>>, vector<8x288xf32>
      %c48 = arith.constant 48 : index
      %c0_26 = arith.constant 0 : index
      %45 = vector.load %arg13[%c48, %c0_26] : memref<72x288xf32, #tpu.memory_space<vmem>>, vector<8x288xf32>
      tpu.vector_store %arg13[%c48, %c0_26], %44 {strides = array<i32>} : memref<72x288xf32, #tpu.memory_space<vmem>>, vector<8x288xf32>,
      %c0_27 = arith.constant 0 : index
      %c37 = arith.constant 37 : index
      %46 = vector.load %arg12[%c0_27, %c37] : memref<8x326xf32, #tpu.memory_space<vmem>>, vector<8x288xf32>
      %c56 = arith.constant 56 : index
      %c0_28 = arith.constant 0 : index
      %47 = vector.load %arg13[%c56, %c0_28] : memref<72x288xf32, #tpu.memory_space<vmem>>, vector<8x288xf32>
      tpu.vector_store %arg13[%c56, %c0_28], %46 {strides = array<i32>} : memref<72x288xf32, #tpu.memory_space<vmem>>, vector<8x288xf32>,
      %c0_29 = arith.constant 0 : index
      %c38 = arith.constant 38 : index
      %48 = vector.load %arg12[%c0_29, %c38] : memref<8x326xf32, #tpu.memory_space<vmem>>, vector<8x288xf32>
      %c64 = arith.constant 64 : index
      %c0_30 = arith.constant 0 : index
      %49 = vector.load %arg13[%c64, %c0_30] : memref<72x288xf32, #tpu.memory_space<vmem>>, vector<8x288xf32>
      tpu.vector_store %arg13[%c64, %c0_30], %48 {strides = array<i32>} : memref<72x288xf32, #tpu.memory_space<vmem>>, vector<8x288xf32>,
      %c0_31 = arith.constant 0 : index
      %c0_32 = arith.constant 0 : index
      %50 = vector.load %arg13[%c0_31, %c0_32] : memref<72x288xf32, #tpu.memory_space<vmem>>, vector<72x288xf32>
      %51 = arith.truncf %50 : vector<72x288xf32> to vector<72x288xbf16>
      %c0_33 = arith.constant 0 : index
      %c0_34 = arith.constant 0 : index
      %c0_35 = arith.constant 0 : index
      %52 = vector.load %arg3[%c0_33, %c0_34, %c0_35] : memref<1x8x72xbf16, #tpu.memory_space<vmem>>, vector<1x8x72xbf16>
      %53 = vector.shape_cast %52 : vector<1x8x72xbf16> to vector<8x72xbf16>
      %cst = arith.constant dense<0.000000e+00> : vector<8x288xf32>
      %54 = tpu.matmul %53, %51, %cst {dimension_numbers = #tpu.dot_dimension_numbers<[1], [0], [0], [1], [0, 0, 1, 1], [], []>} : vector<8x72xbf16>, vector<72x288xbf16>, vector<8x288xf32> -> vector<8x288xf32>
      %c0_36 = arith.constant 0 : index
      %c0_37 = arith.constant 0 : index
      %c0_38 = arith.constant 0 : index
      %55 = vector.load %arg4[%c0_36, %c0_37, %c0_38] : memref<1x8x1xf32, #tpu.memory_space<vmem>>, vector<1x8x1xf32>
      %56 = vector.shape_cast %55 : vector<1x8x1xf32> to vector<8x1xf32>
      %57 = vector.broadcast %56 : vector<8x1xf32> to vector<8x288xf32>
      %58 = arith.addf %54, %57 : vector<8x288xf32>
      %cst_39 = arith.constant 0.000000e+00 : f32
      %59 = vector.broadcast %cst_39 : f32 to vector<8x288xf32>
      %60 = arith.maximumf %58, %59 : vector<8x288xf32>
      %61 = vector.broadcast %20 : vector<1x288xf32> to vector<8x288xf32>
      %62 = arith.mulf %60, %61 : vector<8x288xf32>
      %c0_40 = arith.constant 0 : index
      %c19_41 = arith.constant 19 : index
      %63 = vector.load %arg12[%c0_40, %c19_41] : memref<8x326xf32, #tpu.memory_space<vmem>>, vector<8x288xf32>
      tpu.vector_store %arg12[%c0_40, %c19_41], %62 {strides = array<i32>} : memref<8x326xf32, #tpu.memory_space<vmem>>, vector<8x288xf32>,
      %c0_42 = arith.constant 0 : index
      %c0_43 = arith.constant 0 : index
      %64 = vector.load %arg12[%c0_42, %c0_43] : memref<8x326xf32, #tpu.memory_space<vmem>>, vector<8x288xf32>
      %c0_44 = arith.constant 0 : index
      %c0_45 = arith.constant 0 : index
      %65 = vector.load %arg13[%c0_44, %c0_45] : memref<72x288xf32, #tpu.memory_space<vmem>>, vector<8x288xf32>
      tpu.vector_store %arg13[%c0_44, %c0_45], %64 {strides = array<i32>} : memref<72x288xf32, #tpu.memory_space<vmem>>, vector<8x288xf32>,
      %c0_46 = arith.constant 0 : index
      %c1_47 = arith.constant 1 : index
      %66 = vector.load %arg12[%c0_46, %c1_47] : memref<8x326xf32, #tpu.memory_space<vmem>>, vector<8x288xf32>
      %c8_48 = arith.constant 8 : index
      %c0_49 = arith.constant 0 : index
      %67 = vector.load %arg13[%c8_48, %c0_49] : memref<72x288xf32, #tpu.memory_space<vmem>>, vector<8x288xf32>
      tpu.vector_store %arg13[%c8_48, %c0_49], %66 {strides = array<i32>} : memref<72x288xf32, #tpu.memory_space<vmem>>, vector<8x288xf32>,
      %c0_50 = arith.constant 0 : index
      %c2_51 = arith.constant 2 : index
      %68 = vector.load %arg12[%c0_50, %c2_51] : memref<8x326xf32, #tpu.memory_space<vmem>>, vector<8x288xf32>
      %c16_52 = arith.constant 16 : index
      %c0_53 = arith.constant 0 : index
      %69 = vector.load %arg13[%c16_52, %c0_53] : memref<72x288xf32, #tpu.memory_space<vmem>>, vector<8x288xf32>
      tpu.vector_store %arg13[%c16_52, %c0_53], %68 {strides = array<i32>} : memref<72x288xf32, #tpu.memory_space<vmem>>, vector<8x288xf32>,
      %c0_54 = arith.constant 0 : index
      %c18_55 = arith.constant 18 : index
      %70 = vector.load %arg12[%c0_54, %c18_55] : memref<8x326xf32, #tpu.memory_space<vmem>>, vector<8x288xf32>
      %c24_56 = arith.constant 24 : index
      %c0_57 = arith.constant 0 : index
      %71 = vector.load %arg13[%c24_56, %c0_57] : memref<72x288xf32, #tpu.memory_space<vmem>>, vector<8x288xf32>
      tpu.vector_store %arg13[%c24_56, %c0_57], %70 {strides = array<i32>} : memref<72x288xf32, #tpu.memory_space<vmem>>, vector<8x288xf32>,
      %c0_58 = arith.constant 0 : index
      %c19_59 = arith.constant 19 : index
      %72 = vector.load %arg12[%c0_58, %c19_59] : memref<8x326xf32, #tpu.memory_space<vmem>>, vector<8x288xf32>
      %c32_60 = arith.constant 32 : index
      %c0_61 = arith.constant 0 : index
      %73 = vector.load %arg13[%c32_60, %c0_61] : memref<72x288xf32, #tpu.memory_space<vmem>>, vector<8x288xf32>
      tpu.vector_store %arg13[%c32_60, %c0_61], %72 {strides = array<i32>} : memref<72x288xf32, #tpu.memory_space<vmem>>, vector<8x288xf32>,
      %c0_62 = arith.constant 0 : index
      %c20_63 = arith.constant 20 : index
      %74 = vector.load %arg12[%c0_62, %c20_63] : memref<8x326xf32, #tpu.memory_space<vmem>>, vector<8x288xf32>
      %c40_64 = arith.constant 40 : index
      %c0_65 = arith.constant 0 : index
      %75 = vector.load %arg13[%c40_64, %c0_65] : memref<72x288xf32, #tpu.memory_space<vmem>>, vector<8x288xf32>
      tpu.vector_store %arg13[%c40_64, %c0_65], %74 {strides = array<i32>} : memref<72x288xf32, #tpu.memory_space<vmem>>, vector<8x288xf32>,
      %c0_66 = arith.constant 0 : index
      %c36_67 = arith.constant 36 : index
      %76 = vector.load %arg12[%c0_66, %c36_67] : memref<8x326xf32, #tpu.memory_space<vmem>>, vector<8x288xf32>
      %c48_68 = arith.constant 48 : index
      %c0_69 = arith.constant 0 : index
      %77 = vector.load %arg13[%c48_68, %c0_69] : memref<72x288xf32, #tpu.memory_space<vmem>>, vector<8x288xf32>
      tpu.vector_store %arg13[%c48_68, %c0_69], %76 {strides = array<i32>} : memref<72x288xf32, #tpu.memory_space<vmem>>, vector<8x288xf32>,
      %c0_70 = arith.constant 0 : index
      %c37_71 = arith.constant 37 : index
      %78 = vector.load %arg12[%c0_70, %c37_71] : memref<8x326xf32, #tpu.memory_space<vmem>>, vector<8x288xf32>
      %c56_72 = arith.constant 56 : index
      %c0_73 = arith.constant 0 : index
      %79 = vector.load %arg13[%c56_72, %c0_73] : memref<72x288xf32, #tpu.memory_space<vmem>>, vector<8x288xf32>
      tpu.vector_store %arg13[%c56_72, %c0_73], %78 {strides = array<i32>} : memref<72x288xf32, #tpu.memory_space<vmem>>, vector<8x288xf32>,
      %c0_74 = arith.constant 0 : index
      %c38_75 = arith.constant 38 : index
      %80 = vector.load %arg12[%c0_74, %c38_75] : memref<8x326xf32, #tpu.memory_space<vmem>>, vector<8x288xf32>
      %c64_76 = arith.constant 64 : index
      %c0_77 = arith.constant 0 : index
      %81 = vector.load %arg13[%c64_76, %c0_77] : memref<72x288xf32, #tpu.memory_space<vmem>>, vector<8x288xf32>
      tpu.vector_store %arg13[%c64_76, %c0_77], %80 {strides = array<i32>} : memref<72x288xf32, #tpu.memory_space<vmem>>, vector<8x288xf32>,
      %c0_78 = arith.constant 0 : index
      %c0_79 = arith.constant 0 : index
      %82 = vector.load %arg13[%c0_78, %c0_79] : memref<72x288xf32, #tpu.memory_space<vmem>>, vector<72x288xf32>
      %83 = arith.truncf %82 : vector<72x288xf32> to vector<72x288xbf16>
      %c0_80 = arith.constant 0 : index
      %c0_81 = arith.constant 0 : index
      %c0_82 = arith.constant 0 : index
      %84 = vector.load %arg5[%c0_80, %c0_81, %c0_82] : memref<1x8x72xbf16, #tpu.memory_space<vmem>>, vector<1x8x72xbf16>
      %85 = vector.shape_cast %84 : vector<1x8x72xbf16> to vector<8x72xbf16>
      %cst_83 = arith.constant dense<0.000000e+00> : vector<8x288xf32>
      %86 = tpu.matmul %85, %83, %cst_83 {dimension_numbers = #tpu.dot_dimension_numbers<[1], [0], [0], [1], [0, 0, 1, 1], [], []>} : vector<8x72xbf16>, vector<72x288xbf16>, vector<8x288xf32> -> vector<8x288xf32>
      %c0_84 = arith.constant 0 : index
      %c0_85 = arith.constant 0 : index
      %c0_86 = arith.constant 0 : index
      %87 = vector.load %arg6[%c0_84, %c0_85, %c0_86] : memref<1x8x1xf32, #tpu.memory_space<vmem>>, vector<1x8x1xf32>
      %88 = vector.shape_cast %87 : vector<1x8x1xf32> to vector<8x1xf32>
      %89 = vector.broadcast %88 : vector<8x1xf32> to vector<8x288xf32>
      %90 = arith.addf %86, %89 : vector<8x288xf32>
      %91 = vector.broadcast %20 : vector<1x288xf32> to vector<8x288xf32>
      %92 = arith.mulf %90, %91 : vector<8x288xf32>
      %cst_87 = arith.constant dense<0.000000e+00> : vector<8xf32>
      %93 = vector.multi_reduction <add>, %92, %cst_87 [1] : vector<8x288xf32> to vector<8xf32>
      %94 = vector.shape_cast %93 : vector<8xf32> to vector<8x1xf32>
      %cst_88 = arith.constant 3.906250e-03 : f32
      %95 = vector.broadcast %cst_88 : f32 to vector<8x1xf32>
      %96 = arith.mulf %94, %95 : vector<8x1xf32>
      %c0_89 = arith.constant 0 : index
      %c0_90 = arith.constant 0 : index
      %c0_91 = arith.constant 0 : index
      %97 = vector.load %arg7[%c0_89, %c0_90, %c0_91] : memref<1x8x2xf32, #tpu.memory_space<vmem>>, vector<1x8x2xf32>
      %98 = vector.shape_cast %97 : vector<1x8x2xf32> to vector<8x2xf32>
      %99 = vector.broadcast %96 : vector<8x1xf32> to vector<8x2xf32>
      %100 = arith.mulf %98, %99 : vector<8x2xf32>
      %cst_92 = arith.constant dense<0.000000e+00> : vector<2xf32>
      %101 = vector.multi_reduction <add>, %100, %cst_92 [0] : vector<8x2xf32> to vector<2xf32>
      %102 = vector.shape_cast %101 : vector<2xf32> to vector<1x2xf32>
      %c0_93 = arith.constant 0 : index
      %c0_94 = arith.constant 0 : index
      %c0_95 = arith.constant 0 : index
      %103 = vector.load %arg8[%c0_93, %c0_94, %c0_95] : memref<1x1x2xf32, #tpu.memory_space<vmem>>, vector<1x1x2xf32>
      %104 = vector.shape_cast %103 : vector<1x1x2xf32> to vector<1x2xf32>
      %105 = arith.addf %102, %104 : vector<1x2xf32>
      %cst_96 = arith.constant 0.000000e+00 : f32
      %106 = vector.broadcast %cst_96 : f32 to vector<1x2xf32>
      %107 = arith.maximumf %105, %106 : vector<1x2xf32>
      %c0_97 = arith.constant 0 : index
      %c0_98 = arith.constant 0 : index
      %c0_99 = arith.constant 0 : index
      %108 = vector.load %arg9[%c0_97, %c0_98, %c0_99] : memref<1x8x2xf32, #tpu.memory_space<vmem>>, vector<1x8x2xf32>
      %109 = vector.shape_cast %108 : vector<1x8x2xf32> to vector<8x2xf32>
      %110 = vector.broadcast %107 : vector<1x2xf32> to vector<8x2xf32>
      %111 = arith.mulf %109, %110 : vector<8x2xf32>
      %cst_100 = arith.constant dense<0.000000e+00> : vector<8xf32>
      %112 = vector.multi_reduction <add>, %111, %cst_100 [1] : vector<8x2xf32> to vector<8xf32>
      %113 = vector.shape_cast %112 : vector<8xf32> to vector<8x1xf32>
      %c0_101 = arith.constant 0 : index
      %c0_102 = arith.constant 0 : index
      %c0_103 = arith.constant 0 : index
      %114 = vector.load %arg10[%c0_101, %c0_102, %c0_103] : memref<1x8x1xf32, #tpu.memory_space<vmem>>, vector<1x8x1xf32>
      %115 = vector.shape_cast %114 : vector<1x8x1xf32> to vector<8x1xf32>
      %116 = arith.addf %113, %115 : vector<8x1xf32>
      %117 = arith.negf %116 : vector<8x1xf32>
      %118 = math.exp %117 : vector<8x1xf32>
      %cst_104 = arith.constant 1.000000e+00 : f32
      %119 = vector.broadcast %cst_104 : f32 to vector<8x1xf32>
      %120 = arith.addf %119, %118 : vector<8x1xf32>
      %121 = arith.divf %119, %120 : vector<8x1xf32>
      %122 = vector.broadcast %121 : vector<8x1xf32> to vector<8x288xf32>
      %123 = arith.mulf %90, %122 : vector<8x288xf32>
      %c0_105 = arith.constant 0 : index
      %c0_106 = arith.constant 0 : index
      %124 = vector.load %arg14[%c0_105, %c0_106] : memref<8x288xf32, #tpu.memory_space<vmem>>, vector<8x288xf32>
      %125 = arith.addf %123, %124 : vector<8x288xf32>
      %126 = vector.broadcast %20 : vector<1x288xf32> to vector<8x288xf32>
      %127 = arith.mulf %125, %126 : vector<8x288xf32>
      %c0_107 = arith.constant 0 : index
      %c19_108 = arith.constant 19 : index
      %128 = vector.load %arg12[%c0_107, %c19_108] : memref<8x326xf32, #tpu.memory_space<vmem>>, vector<8x288xf32>
      tpu.vector_store %arg12[%c0_107, %c19_108], %127 {strides = array<i32>} : memref<8x326xf32, #tpu.memory_space<vmem>>, vector<8x288xf32>,
    } else {
    }
    %c2_i32_6 = arith.constant 2 : i32
    %27 = arith.cmpi eq, %arg1, %c2_i32_6 : i32
    %28 = arith.extui %27 : i1 to i32
    %c0_i32_7 = arith.constant 0 : i32
    %29 = arith.cmpi ne, %28, %c0_i32_7 : i32
    scf.if %29 {
      %c0 = arith.constant 0 : index
      %c0_8 = arith.constant 0 : index
      %30 = vector.load %arg12[%c0, %c0_8] : memref<8x326xf32, #tpu.memory_space<vmem>>, vector<8x288xf32>
      %c0_9 = arith.constant 0 : index
      %c0_10 = arith.constant 0 : index
      %31 = vector.load %arg13[%c0_9, %c0_10] : memref<72x288xf32, #tpu.memory_space<vmem>>, vector<8x288xf32>
      tpu.vector_store %arg13[%c0_9, %c0_10], %30 {strides = array<i32>} : memref<72x288xf32, #tpu.memory_space<vmem>>, vector<8x288xf32>,
      %c0_11 = arith.constant 0 : index
      %c1 = arith.constant 1 : index
      %32 = vector.load %arg12[%c0_11, %c1] : memref<8x326xf32, #tpu.memory_space<vmem>>, vector<8x288xf32>
      %c8 = arith.constant 8 : index
      %c0_12 = arith.constant 0 : index
      %33 = vector.load %arg13[%c8, %c0_12] : memref<72x288xf32, #tpu.memory_space<vmem>>, vector<8x288xf32>
      tpu.vector_store %arg13[%c8, %c0_12], %32 {strides = array<i32>} : memref<72x288xf32, #tpu.memory_space<vmem>>, vector<8x288xf32>,
      %c0_13 = arith.constant 0 : index
      %c2 = arith.constant 2 : index
      %34 = vector.load %arg12[%c0_13, %c2] : memref<8x326xf32, #tpu.memory_space<vmem>>, vector<8x288xf32>
      %c16 = arith.constant 16 : index
      %c0_14 = arith.constant 0 : index
      %35 = vector.load %arg13[%c16, %c0_14] : memref<72x288xf32, #tpu.memory_space<vmem>>, vector<8x288xf32>
      tpu.vector_store %arg13[%c16, %c0_14], %34 {strides = array<i32>} : memref<72x288xf32, #tpu.memory_space<vmem>>, vector<8x288xf32>,
      %c0_15 = arith.constant 0 : index
      %c18 = arith.constant 18 : index
      %36 = vector.load %arg12[%c0_15, %c18] : memref<8x326xf32, #tpu.memory_space<vmem>>, vector<8x288xf32>
      %c24 = arith.constant 24 : index
      %c0_16 = arith.constant 0 : index
      %37 = vector.load %arg13[%c24, %c0_16] : memref<72x288xf32, #tpu.memory_space<vmem>>, vector<8x288xf32>
      tpu.vector_store %arg13[%c24, %c0_16], %36 {strides = array<i32>} : memref<72x288xf32, #tpu.memory_space<vmem>>, vector<8x288xf32>,
      %c0_17 = arith.constant 0 : index
      %c19 = arith.constant 19 : index
      %38 = vector.load %arg12[%c0_17, %c19] : memref<8x326xf32, #tpu.memory_space<vmem>>, vector<8x288xf32>
      %c32 = arith.constant 32 : index
      %c0_18 = arith.constant 0 : index
      %39 = vector.load %arg13[%c32, %c0_18] : memref<72x288xf32, #tpu.memory_space<vmem>>, vector<8x288xf32>
      tpu.vector_store %arg13[%c32, %c0_18], %38 {strides = array<i32>} : memref<72x288xf32, #tpu.memory_space<vmem>>, vector<8x288xf32>,
      %c0_19 = arith.constant 0 : index
      %c20 = arith.constant 20 : index
      %40 = vector.load %arg12[%c0_19, %c20] : memref<8x326xf32, #tpu.memory_space<vmem>>, vector<8x288xf32>
      %c40 = arith.constant 40 : index
      %c0_20 = arith.constant 0 : index
      %41 = vector.load %arg13[%c40, %c0_20] : memref<72x288xf32, #tpu.memory_space<vmem>>, vector<8x288xf32>
      tpu.vector_store %arg13[%c40, %c0_20], %40 {strides = array<i32>} : memref<72x288xf32, #tpu.memory_space<vmem>>, vector<8x288xf32>,
      %c0_21 = arith.constant 0 : index
      %c36 = arith.constant 36 : index
      %42 = vector.load %arg12[%c0_21, %c36] : memref<8x326xf32, #tpu.memory_space<vmem>>, vector<8x288xf32>
      %c48 = arith.constant 48 : index
      %c0_22 = arith.constant 0 : index
      %43 = vector.load %arg13[%c48, %c0_22] : memref<72x288xf32, #tpu.memory_space<vmem>>, vector<8x288xf32>
      tpu.vector_store %arg13[%c48, %c0_22], %42 {strides = array<i32>} : memref<72x288xf32, #tpu.memory_space<vmem>>, vector<8x288xf32>,
      %c0_23 = arith.constant 0 : index
      %c37 = arith.constant 37 : index
      %44 = vector.load %arg12[%c0_23, %c37] : memref<8x326xf32, #tpu.memory_space<vmem>>, vector<8x288xf32>
      %c56 = arith.constant 56 : index
      %c0_24 = arith.constant 0 : index
      %45 = vector.load %arg13[%c56, %c0_24] : memref<72x288xf32, #tpu.memory_space<vmem>>, vector<8x288xf32>
      tpu.vector_store %arg13[%c56, %c0_24], %44 {strides = array<i32>} : memref<72x288xf32, #tpu.memory_space<vmem>>, vector<8x288xf32>,
      %c0_25 = arith.constant 0 : index
      %c38 = arith.constant 38 : index
      %46 = vector.load %arg12[%c0_25, %c38] : memref<8x326xf32, #tpu.memory_space<vmem>>, vector<8x288xf32>
      %c64 = arith.constant 64 : index
      %c0_26 = arith.constant 0 : index
      %47 = vector.load %arg13[%c64, %c0_26] : memref<72x288xf32, #tpu.memory_space<vmem>>, vector<8x288xf32>
      tpu.vector_store %arg13[%c64, %c0_26], %46 {strides = array<i32>} : memref<72x288xf32, #tpu.memory_space<vmem>>, vector<8x288xf32>,
      %c0_27 = arith.constant 0 : index
      %c0_28 = arith.constant 0 : index
      %48 = vector.load %arg13[%c0_27, %c0_28] : memref<72x288xf32, #tpu.memory_space<vmem>>, vector<72x288xf32>
      %49 = arith.truncf %48 : vector<72x288xf32> to vector<72x288xbf16>
      %c0_29 = arith.constant 0 : index
      %c0_30 = arith.constant 0 : index
      %c0_31 = arith.constant 0 : index
      %50 = vector.load %arg3[%c0_29, %c0_30, %c0_31] : memref<1x8x72xbf16, #tpu.memory_space<vmem>>, vector<1x8x72xbf16>
      %51 = vector.shape_cast %50 : vector<1x8x72xbf16> to vector<8x72xbf16>
      %cst = arith.constant dense<0.000000e+00> : vector<8x288xf32>
      %52 = tpu.matmul %51, %49, %cst {dimension_numbers = #tpu.dot_dimension_numbers<[1], [0], [0], [1], [0, 0, 1, 1], [], []>} : vector<8x72xbf16>, vector<72x288xbf16>, vector<8x288xf32> -> vector<8x288xf32>
      %c0_32 = arith.constant 0 : index
      %c0_33 = arith.constant 0 : index
      %c0_34 = arith.constant 0 : index
      %53 = vector.load %arg4[%c0_32, %c0_33, %c0_34] : memref<1x8x1xf32, #tpu.memory_space<vmem>>, vector<1x8x1xf32>
      %54 = vector.shape_cast %53 : vector<1x8x1xf32> to vector<8x1xf32>
      %55 = vector.broadcast %54 : vector<8x1xf32> to vector<8x288xf32>
      %56 = arith.addf %52, %55 : vector<8x288xf32>
      %c0_35 = arith.constant 0 : index
      %c0_36 = arith.constant 0 : index
      %c0_37 = arith.constant 0 : index
      %57 = vector.load %arg2[%c0_35, %c0_36, %c0_37] : memref<1x8x326xf32, #tpu.memory_space<vmem>>, vector<1x8x326xf32>
      %58 = vector.shape_cast %57 : vector<1x8x326xf32> to vector<8x326xf32>
      %59 = vector.extract_strided_slice %58 {offsets = [0, 19], sizes = [8, 288], strides = [1, 1]} : vector<8x326xf32> to vector<8x288xf32>
      %60 = arith.addf %56, %59 : vector<8x288xf32>
      %61 = vector.broadcast %20 : vector<1x288xf32> to vector<8x288xf32>
      %62 = arith.mulf %60, %61 : vector<8x288xf32>
      %c0_38 = arith.constant 0 : index
      %c0_39 = arith.constant 0 : index
      %c0_40 = arith.constant 0 : index
      %63 = vector.load %arg11[%c0_38, %c0_39, %c0_40] : memref<1x8x288xf32, #tpu.memory_space<vmem>>, vector<1x8x288xf32>
      %64 = vector.shape_cast %63 : vector<1x8x288xf32> to vector<8x288xf32>
      %65 = vector.shape_cast %62 : vector<8x288xf32> to vector<1x8x288xf32>
      tpu.vector_store %arg11[%c0_38, %c0_39, %c0_40], %65 {strides = array<i32>} : memref<1x8x288xf32, #tpu.memory_space<vmem>>, vector<1x8x288xf32>,
    } else {
    }
    return
  }
  func.func @transform_0(%arg0: i32, %arg1: i32) -> (i32, i32, i32) {
    %c0_i32 = arith.constant 0 : i32
    %c0_i32_0 = arith.constant 0 : i32
    %c0_i32_1 = arith.constant 0 : i32
    return %arg0, %c0_i32, %c0_i32_0 : i32, i32, i32
  }
  func.func @transform_1(%arg0: i32, %arg1: i32) -> (i32, i32, i32) {
    %c0_i32 = arith.constant 0 : i32
    %c0_i32_0 = arith.constant 0 : i32
    %c0_i32_1 = arith.constant 0 : i32
    return %arg1, %c0_i32, %c0_i32_0 : i32, i32, i32
  }
  func.func @transform_2(%arg0: i32, %arg1: i32) -> (i32, i32, i32) {
    %c0_i32 = arith.constant 0 : i32
    %c0_i32_0 = arith.constant 0 : i32
    %c0_i32_1 = arith.constant 0 : i32
    return %arg1, %c0_i32, %c0_i32_0 : i32, i32, i32
  }
  func.func @transform_3(%arg0: i32, %arg1: i32) -> (i32, i32, i32) {
    %c0_i32 = arith.constant 0 : i32
    %c0_i32_0 = arith.constant 0 : i32
    %c0_i32_1 = arith.constant 0 : i32
    return %arg1, %c0_i32, %c0_i32_0 : i32, i32, i32
  }
  func.func @transform_4(%arg0: i32, %arg1: i32) -> (i32, i32, i32) {
    %c0_i32 = arith.constant 0 : i32
    %c0_i32_0 = arith.constant 0 : i32
    %c0_i32_1 = arith.constant 0 : i32
    return %arg1, %c0_i32, %c0_i32_0 : i32, i32, i32
  }
  func.func @transform_5(%arg0: i32, %arg1: i32) -> (i32, i32, i32) {
    %c0_i32 = arith.constant 0 : i32
    %c0_i32_0 = arith.constant 0 : i32
    %c0_i32_1 = arith.constant 0 : i32
    return %arg1, %c0_i32, %c0_i32_0 : i32, i32, i32
  }
  func.func @transform_6(%arg0: i32, %arg1: i32) -> (i32, i32, i32) {
    %c0_i32 = arith.constant 0 : i32
    %c0_i32_0 = arith.constant 0 : i32
    %c0_i32_1 = arith.constant 0 : i32
    return %arg1, %c0_i32, %c0_i32_0 : i32, i32, i32
  }
  func.func @transform_7(%arg0: i32, %arg1: i32) -> (i32, i32, i32) {
    %c0_i32 = arith.constant 0 : i32
    %c0_i32_0 = arith.constant 0 : i32
    %c0_i32_1 = arith.constant 0 : i32
    return %arg1, %c0_i32, %c0_i32_0 : i32, i32, i32
  }
  func.func @transform_8(%arg0: i32, %arg1: i32) -> (i32, i32, i32) {
    %c0_i32 = arith.constant 0 : i32
    %c0_i32_0 = arith.constant 0 : i32
    %c0_i32_1 = arith.constant 0 : i32
    return %arg1, %c0_i32, %c0_i32_0 : i32, i32, i32
  }
  func.func @transform_9(%arg0: i32, %arg1: i32) -> (i32, i32, i32) {
    %c0_i32 = arith.constant 0 : i32
    %c0_i32_0 = arith.constant 0 : i32
    %c0_i32_1 = arith.constant 0 : i32
    return %arg0, %c0_i32, %c0_i32_0 : i32, i32, i32
  }
}

</mosaic_0001>

<llo_original>
// kernel: residual_group_forward.1
$region0: #{residual_group_forward.1}
  #allocation0 [shape = 'u32[]', space=smem, size = 0x4, offset = 0x4, fixed_abs, tag = 'smem constant byte address 0x4 - core index']
  #allocation1 [shape = 'u32[72,128]{1,0:T(1,128)}', space=vmem, size = 0x9000, scoped, tag = 'internal scratch']
  #allocation2 [shape = 'f32[8,326]{1,0:T(8,128)}', space=vmem, size = 0x3000, scoped, tag = 'scratch operand']
  #allocation3 [shape = 'f32[72,288]{1,0:T(8,128)}', space=vmem, size = 0x1b000, scoped, tag = 'scratch operand']
  #allocation4 [shape = 'f32[8,288]{1,0:T(8,128)}', space=vmem, size = 0x3000, scoped, tag = 'scratch operand']
  %s0 = inlined_call_operand.vmem [shape: f32[2,8,326], index: 0, kind: input, shape index: {}]
  %s1 = inlined_call_operand.vmem [shape: bf16[3,8,72], index: 1, kind: input, shape index: {}]
  %s2 = inlined_call_operand.vmem [shape: f32[3,8,1], index: 2, kind: input, shape index: {}]
  %s3 = inlined_call_operand.vmem [shape: bf16[3,8,72], index: 3, kind: input, shape index: {}]
  %s4 = inlined_call_operand.vmem [shape: f32[3,8,1], index: 4, kind: input, shape index: {}]
  %s5 = inlined_call_operand.vmem [shape: f32[3,8,2], index: 5, kind: input, shape index: {}]
  %s6 = inlined_call_operand.vmem [shape: f32[3,1,2], index: 6, kind: input, shape index: {}]
  %s7 = inlined_call_operand.vmem [shape: f32[3,8,2], index: 7, kind: input, shape index: {}]
  %s8 = inlined_call_operand.vmem [shape: f32[3,8,1], index: 8, kind: input, shape index: {}]
  %s9 = inlined_call_operand.vmem [shape: f32[2,8,288], index: 9, kind: output, shape index: {}]
  %s10 = sld [smem:[#allocation0]]
  $region81: #{residual_group_forward.1} parent=0
    _
  %s12 = ssub.s32 1, %s10
  %s13 = scalar_select 0, %s12, %s10
  loop: start=0, step=1, limit=8
  $region2: #{residual_group_forward.1} parent=0 // loop_pre_header
    _
  $region3: #{residual_group_forward.1} parent=0 // loop_header
    %s15 = sphi 0, %s19
    %p16 = scmp.ge.s32.totalorder %s15, 8
    %s22 = sphi 0, %s34
    %s23 = sphi 0, %s30
    %s24 = sphi 0, %s22
    %s25 = sphi 0, %s23
    %s26 = sphi 0, %s24
    %s27 = sphi 0, %s25
    %s37 = sphi 0, %s39
    %s40 = sphi 0, %s37
    %s41 = sphi 0, %s40
    %s57 = sphi 0, %s41
    %s63 = sphi 0, %s65
    %s66 = sphi 0, %s63
    %s67 = sphi 0, %s66
    %s83 = sphi 0, %s67
    %s89 = sphi 0, %s91
    %s92 = sphi 0, %s89
    %s93 = sphi 0, %s92
    %s109 = sphi 0, %s93
    %s115 = sphi 0, %s117
    %s118 = sphi 0, %s115
    %s119 = sphi 0, %s118
    %s135 = sphi 0, %s119
    %s141 = sphi 0, %s143
    %s144 = sphi 0, %s141
    %s145 = sphi 0, %s144
    %s161 = sphi 0, %s145
    %s167 = sphi 0, %s169
    %s170 = sphi 0, %s167
    %s171 = sphi 0, %s170
    %s187 = sphi 0, %s171
    %s193 = sphi 0, %s195
    %s196 = sphi 0, %s193
    %s197 = sphi 0, %s196
    %s213 = sphi 0, %s197
    %s219 = sphi 0, %s221
    %s222 = sphi 0, %s219
    %s223 = sphi 0, %s222
    %s239 = sphi 0, %s223
    %s245 = sphi 0, %s247
    %s248 = sphi 0, %s245
    %s249 = sphi 0, %s248
    %s265 = sphi 0, %s249
    %s271 = sphi 0, %s273
    %s274 = sphi 0, %s271
    %s275 = sphi 0, %s274
    %s291 = sphi 0, %s275
  $region4: #{residual_group_forward.1} parent=0 // loop_header_branch
    %18 = sbr.rel (%p16) target = $region8
  $region5: #{residual_group_forward.1} parent=0 // loop_body
    %s20 = ssub.s32 %s15, 1
    %s21 = ssub.s32 %s15, 2
    %s28 = sadd.s32 1, %s23
    %p29 = scmp.ge.s32.totalorder %s28, 3
    %s30 = scalar_select %p29, 0, %s28
    %s31 = sadd.s32 1, %s22
    %s32 = scalar_select %p29, %s31, %s22
    %p33 = scmp.ge.s32.totalorder %s32, 2
    %s34 = scalar_select %p33, 0, %s32
    %s35 = ssub.s32 %s22, %s34
    %p36 = scmp.eq.s32.totalorder %s35, 0
    %s38 = sadd.s32 %s37, 1
    %s39 = scalar_select %p36, %s37, %s38
    %p42 = pneg %p36
    %p43 = scmp.eq.s32.totalorder %s15, 5
    %p44 = por %p42, %p43
    %p45 = scmp.ne.s32.totalorder %s37, %s40
    %p46 = scmp.eq.s32.totalorder %s15, 0
    %p47 = por %p45, %p46
    %p48 = scmp.ne.s32.totalorder %s37, %s40
    %p49 = scmp.eq.s32.totalorder %s20, 5
    %p50 = por %p48, %p49
    %p51 = scmp.ne.s32.totalorder %s40, %s41
    %p52 = scmp.eq.s32.totalorder %s20, 0
    %p53 = por %p51, %p52
    %p54 = scmp.ne.s32.totalorder %s40, %s41
    %p55 = scmp.eq.s32.totalorder %s21, 5
    %p56 = por %p54, %p55
    %p58 = scmp.ne.s32.totalorder %s41, %s57
    %p59 = scmp.eq.s32.totalorder %s21, 0
    %p60 = por %p58, %p59
    %s61 = ssub.s32 %s23, %s30
    %p62 = scmp.eq.s32.totalorder %s61, 0
    %s64 = sadd.s32 %s63, 1
    %s65 = scalar_select %p62, %s63, %s64
    %p68 = pneg %p62
    %p69 = scmp.eq.s32.totalorder %s15, 5
    %p70 = por %p68, %p69
    %p71 = scmp.ne.s32.totalorder %s63, %s66
    %p72 = scmp.eq.s32.totalorder %s15, 0
    %p73 = por %p71, %p72
    %p74 = scmp.ne.s32.totalorder %s63, %s66
    %p75 = scmp.eq.s32.totalorder %s20, 5
    %p76 = por %p74, %p75
    %p77 = scmp.ne.s32.totalorder %s66, %s67
    %p78 = scmp.eq.s32.totalorder %s20, 0
    %p79 = por %p77, %p78
    %p80 = scmp.ne.s32.totalorder %s66, %s67
    %p81 = scmp.eq.s32.totalorder %s21, 5
    %p82 = por %p80, %p81
    %p84 = scmp.ne.s32.totalorder %s67, %s83
    %p85 = scmp.eq.s32.totalorder %s21, 0
    %p86 = por %p84, %p85
    %s87 = ssub.s32 %s23, %s30
    %p88 = scmp.eq.s32.totalorder %s87, 0
    %s90 = sadd.s32 %s89, 1
    %s91 = scalar_select %p88, %s89, %s90
    %p94 = pneg %p88
    %p95 = scmp.eq.s32.totalorder %s15, 5
    %p96 = por %p94, %p95
    %p97 = scmp.ne.s32.totalorder %s89, %s92
    %p98 = scmp.eq.s32.totalorder %s15, 0
    %p99 = por %p97, %p98
    %p100 = scmp.ne.s32.totalorder %s89, %s92
    %p101 = scmp.eq.s32.totalorder %s20, 5
    %p102 = por %p100, %p101
    %p103 = scmp.ne.s32.totalorder %s92, %s93
    %p104 = scmp.eq.s32.totalorder %s20, 0
    %p105 = por %p103, %p104
    %p106 = scmp.ne.s32.totalorder %s92, %s93
    %p107 = scmp.eq.s32.totalorder %s21, 5
    %p108 = por %p106, %p107
    %p110 = scmp.ne.s32.totalorder %s93, %s109
    %p111 = scmp.eq.s32.totalorder %s21, 0
    %p112 = por %p110, %p111
    %s113 = ssub.s32 %s23, %s30
    %p114 = scmp.eq.s32.totalorder %s113, 0
    %s116 = sadd.s32 %s115, 1
    %s117 = scalar_select %p114, %s115, %s116
    %p120 = pneg %p114
    %p121 = scmp.eq.s32.totalorder %s15, 5
    %p122 = por %p120, %p121
    %p123 = scmp.ne.s32.totalorder %s115, %s118
    %p124 = scmp.eq.s32.totalorder %s15, 0
    %p125 = por %p123, %p124
    %p126 = scmp.ne.s32.totalorder %s115, %s118
    %p127 = scmp.eq.s32.totalorder %s20, 5
    %p128 = por %p126, %p127
    %p129 = scmp.ne.s32.totalorder %s118, %s119
    %p130 = scmp.eq.s32.totalorder %s20, 0
    %p131 = por %p129, %p130
    %p132 = scmp.ne.s32.totalorder %s118, %s119
    %p133 = scmp.eq.s32.totalorder %s21, 5
    %p134 = por %p132, %p133
    %p136 = scmp.ne.s32.totalorder %s119, %s135
    %p137 = scmp.eq.s32.totalorder %s21, 0
    %p138 = por %p136, %p137
    %s139 = ssub.s32 %s23, %s30
    %p140 = scmp.eq.s32.totalorder %s139, 0
    %s142 = sadd.s32 %s141, 1
    %s143 = scalar_select %p140, %s141, %s142
    %p146 = pneg %p140
    %p147 = scmp.eq.s32.totalorder %s15, 5
    %p148 = por %p146, %p147
    %p149 = scmp.ne.s32.totalorder %s141, %s144
    %p150 = scmp.eq.s32.totalorder %s15, 0
    %p151 = por %p149, %p150
    %p152 = scmp.ne.s32.totalorder %s141, %s144
    %p153 = scmp.eq.s32.totalorder %s20, 5
    %p154 = por %p152, %p153
    %p155 = scmp.ne.s32.totalorder %s144, %s145
    %p156 = scmp.eq.s32.totalorder %s20, 0
    %p157 = por %p155, %p156
    %p158 = scmp.ne.s32.totalorder %s144, %s145
    %p159 = scmp.eq.s32.totalorder %s21, 5
    %p160 = por %p158, %p159
    %p162 = scmp.ne.s32.totalorder %s145, %s161
    %p163 = scmp.eq.s32.totalorder %s21, 0
    %p164 = por %p162, %p163
    %s165 = ssub.s32 %s23, %s30
    %p166 = scmp.eq.s32.totalorder %s165, 0
    %s168 = sadd.s32 %s167, 1
    %s169 = scalar_select %p166, %s167, %s168
    %p172 = pneg %p166
    %p173 = scmp.eq.s32.totalorder %s15, 5
    %p174 = por %p172, %p173
    %p175 = scmp.ne.s32.totalorder %s167, %s170
    %p176 = scmp.eq.s32.totalorder %s15, 0
    %p177 = por %p175, %p176
    %p178 = scmp.ne.s32.totalorder %s167, %s170
    %p179 = scmp.eq.s32.totalorder %s20, 5
    %p180 = por %p178, %p179
    %p181 = scmp.ne.s32.totalorder %s170, %s171
    %p182 = scmp.eq.s32.totalorder %s20, 0
    %p183 = por %p181, %p182
    %p184 = scmp.ne.s32.totalorder %s170, %s171
    %p185 = scmp.eq.s32.totalorder %s21, 5
    %p186 = por %p184, %p185
    %p188 = scmp.ne.s32.totalorder %s171, %s187
    %p189 = scmp.eq.s32.totalorder %s21, 0
    %p190 = por %p188, %p189
    %s191 = ssub.s32 %s23, %s30
    %p192 = scmp.eq.s32.totalorder %s191, 0
    %s194 = sadd.s32 %s193, 1
    %s195 = scalar_select %p192, %s193, %s194
    %p198 = pneg %p192
    %p199 = scmp.eq.s32.totalorder %s15, 5
    %p200 = por %p198, %p199
    %p201 = scmp.ne.s32.totalorder %s193, %s196
    %p202 = scmp.eq.s32.totalorder %s15, 0
    %p203 = por %p201, %p202
    %p204 = scmp.ne.s32.totalorder %s193, %s196
    %p205 = scmp.eq.s32.totalorder %s20, 5
    %p206 = por %p204, %p205
    %p207 = scmp.ne.s32.totalorder %s196, %s197
    %p208 = scmp.eq.s32.totalorder %s20, 0
    %p209 = por %p207, %p208
    %p210 = scmp.ne.s32.totalorder %s196, %s197
    %p211 = scmp.eq.s32.totalorder %s21, 5
    %p212 = por %p210, %p211
    %p214 = scmp.ne.s32.totalorder %s197, %s213
    %p215 = scmp.eq.s32.totalorder %s21, 0
    %p216 = por %p214, %p215
    %s217 = ssub.s32 %s23, %s30
    %p218 = scmp.eq.s32.totalorder %s217, 0
    %s220 = sadd.s32 %s219, 1
    %s221 = scalar_select %p218, %s219, %s220
    %p224 = pneg %p218
    %p225 = scmp.eq.s32.totalorder %s15, 5
    %p226 = por %p224, %p225
    %p227 = scmp.ne.s32.totalorder %s219, %s222
    %p228 = scmp.eq.s32.totalorder %s15, 0
    %p229 = por %p227, %p228
    %p230 = scmp.ne.s32.totalorder %s219, %s222
    %p231 = scmp.eq.s32.totalorder %s20, 5
    %p232 = por %p230, %p231
    %p233 = scmp.ne.s32.totalorder %s222, %s223
    %p234 = scmp.eq.s32.totalorder %s20, 0
    %p235 = por %p233, %p234
    %p236 = scmp.ne.s32.totalorder %s222, %s223
    %p237 = scmp.eq.s32.totalorder %s21, 5
    %p238 = por %p236, %p237
    %p240 = scmp.ne.s32.totalorder %s223, %s239
    %p241 = scmp.eq.s32.totalorder %s21, 0
    %p242 = por %p240, %p241
    %s243 = ssub.s32 %s23, %s30
    %p244 = scmp.eq.s32.totalorder %s243, 0
    %s246 = sadd.s32 %s245, 1
    %s247 = scalar_select %p244, %s245, %s246
    %p250 = pneg %p244
    %p251 = scmp.eq.s32.totalorder %s15, 5
    %p252 = por %p250, %p251
    %p253 = scmp.ne.s32.totalorder %s245, %s248
    %p254 = scmp.eq.s32.totalorder %s15, 0
    %p255 = por %p253, %p254
    %p256 = scmp.ne.s32.totalorder %s245, %s248
    %p257 = scmp.eq.s32.totalorder %s20, 5
    %p258 = por %p256, %p257
    %p259 = scmp.ne.s32.totalorder %s248, %s249
    %p260 = scmp.eq.s32.totalorder %s20, 0
    %p261 = por %p259, %p260
    %p262 = scmp.ne.s32.totalorder %s248, %s249
    %p263 = scmp.eq.s32.totalorder %s21, 5
    %p264 = por %p262, %p263
    %p266 = scmp.ne.s32.totalorder %s249, %s265
    %p267 = scmp.eq.s32.totalorder %s21, 0
    %p268 = por %p266, %p267
    %s269 = ssub.s32 %s22, %s34
    %p270 = scmp.eq.s32.totalorder %s269, 0
    %s272 = sadd.s32 %s271, 1
    %s273 = scalar_select %p270, %s271, %s272
    %p276 = pneg %p270
    %p277 = scmp.eq.s32.totalorder %s15, 5
    %p278 = por %p276, %p277
    %p279 = scmp.ne.s32.totalorder %s271, %s274
    %p280 = scmp.eq.s32.totalorder %s15, 0
    %p281 = por %p279, %p280
    %p282 = scmp.ne.s32.totalorder %s271, %s274
    %p283 = scmp.eq.s32.totalorder %s20, 5
    %p284 = por %p282, %p283
    %p285 = scmp.ne.s32.totalorder %s274, %s275
    %p286 = scmp.eq.s32.totalorder %s20, 0
    %p287 = por %p285, %p286
    %p288 = scmp.ne.s32.totalorder %s274, %s275
    %p289 = scmp.eq.s32.totalorder %s21, 5
    %p290 = por %p288, %p289
    %p292 = scmp.ne.s32.totalorder %s275, %s291
    %p293 = scmp.eq.s32.totalorder %s21, 0
    %p294 = por %p292, %p293
    %p295 = scmp.le.s32.totalorder 1, %s15
    %p296 = scmp.lt.s32.totalorder %s15, 7
    %p297 = pnand %p295, %p296
    %p298 = pneg %p297
    // Predicated region
    $region9: #{residual_group_forward.1} parent=5 // pred_check
      _
    $region10: #{residual_group_forward.1} parent=5 // pred_check_branch
      %300 = sbr.rel (%p297) target = $region12
    $region11: #{residual_group_forward.1} parent=5 // pred_region
      %s301 = ssub.s32 %s15, 1
    $region12: #{residual_group_forward.1} parent=5 // pred_fallthru
      _
    %p302 = scmp.lt.s32.totalorder %s15, 6
    // Predicated region
    $region13: #{residual_group_forward.1} parent=5 // pred_check
      %p303 = pneg %p302
    $region14: #{residual_group_forward.1} parent=5 // pred_check_branch
      %305 = sbr.rel (%p303) target = $region16
    $region15: #{residual_group_forward.1} parent=5 // pred_region
      // Predicated region
      $region17: #{residual_group_forward.1} parent=15 // pred_check
        %p306 = pneg %p47
      $region18: #{residual_group_forward.1} parent=15 // pred_check_branch
        %308 = sbr.rel (%p306) target = $region20
      $region19: #{residual_group_forward.1} parent=15 // pred_region
        %p309 = scmp.lt.s32.totalorder %s22, 1
        %s310 = scalar_select %p309, %s22, 1
        %s311 = smul.addr %s310, 3
        %s312 = smul.addr %s311, 8
        %s313 = scalar_lea.vmem %s0, %s312
      $region20: #{residual_group_forward.1} parent=15 // pred_fallthru
        _
      // Predicated region
      $region21: #{residual_group_forward.1} parent=15 // pred_check
        %p314 = pneg %p73
      $region22: #{residual_group_forward.1} parent=15 // pred_check_branch
        %316 = sbr.rel (%p314) target = $region24
      $region23: #{residual_group_forward.1} parent=15 // pred_region
        %p317 = scmp.lt.s32.totalorder %s23, 2
        %s318 = scalar_select %p317, %s23, 2
        %s319 = smul.addr %s318, 4
        %s320 = scalar_lea.vmem %s1, %s319
      $region24: #{residual_group_forward.1} parent=15 // pred_fallthru
        _
      // Predicated region
      $region25: #{residual_group_forward.1} parent=15 // pred_check
        %p321 = pneg %p99
      $region26: #{residual_group_forward.1} parent=15 // pred_check_branch
        %323 = sbr.rel (%p321) target = $region28
      $region27: #{residual_group_forward.1} parent=15 // pred_region
        %p324 = scmp.lt.s32.totalorder %s23, 2
        %s325 = scalar_select %p324, %s23, 2
        %s326 = smul.addr %s325, 8
        %s327 = scalar_lea.vmem %s2, %s326
      $region28: #{residual_group_forward.1} parent=15 // pred_fallthru
        _
      // Predicated region
      $region29: #{residual_group_forward.1} parent=15 // pred_check
        %p328 = pneg %p125
      $region30: #{residual_group_forward.1} parent=15 // pred_check_branch
        %330 = sbr.rel (%p328) target = $region32
      $region31: #{residual_group_forward.1} parent=15 // pred_region
        %p331 = scmp.lt.s32.totalorder %s23, 2
        %s332 = scalar_select %p331, %s23, 2
        %s333 = smul.addr %s332, 4
        %s334 = scalar_lea.vmem %s3, %s333
      $region32: #{residual_group_forward.1} parent=15 // pred_fallthru
        _
      // Predicated region
      $region33: #{residual_group_forward.1} parent=15 // pred_check
        %p335 = pneg %p151
      $region34: #{residual_group_forward.1} parent=15 // pred_check_branch
        %337 = sbr.rel (%p335) target = $region36
      $region35: #{residual_group_forward.1} parent=15 // pred_region
        %p338 = scmp.lt.s32.totalorder %s23, 2
        %s339 = scalar_select %p338, %s23, 2
        %s340 = smul.addr %s339, 8
        %s341 = scalar_lea.vmem %s4, %s340
      $region36: #{residual_group_forward.1} parent=15 // pred_fallthru
        _
      // Predicated region
      $region37: #{residual_group_forward.1} parent=15 // pred_check
        %p342 = pneg %p177
      $region38: #{residual_group_forward.1} parent=15 // pred_check_branch
        %344 = sbr.rel (%p342) target = $region40
      $region39: #{residual_group_forward.1} parent=15 // pred_region
        %p345 = scmp.lt.s32.totalorder %s23, 2
        %s346 = scalar_select %p345, %s23, 2
        %s347 = smul.addr %s346, 8
        %s348 = scalar_lea.vmem %s5, %s347
      $region40: #{residual_group_forward.1} parent=15 // pred_fallthru
        _
      // Predicated region
      $region41: #{residual_group_forward.1} parent=15 // pred_check
        %p349 = pneg %p203
      $region42: #{residual_group_forward.1} parent=15 // pred_check_branch
        %351 = sbr.rel (%p349) target = $region44
      $region43: #{residual_group_forward.1} parent=15 // pred_region
        %p352 = scmp.lt.s32.totalorder %s23, 2
        %s353 = scalar_select %p352, %s23, 2
        %s354 = scalar_lea.vmem %s6, %s353
      $region44: #{residual_group_forward.1} parent=15 // pred_fallthru
        _
      // Predicated region
      $region45: #{residual_group_forward.1} parent=15 // pred_check
        %p355 = pneg %p229
      $region46: #{residual_group_forward.1} parent=15 // pred_check_branch
        %357 = sbr.rel (%p355) target = $region48
      $region47: #{residual_group_forward.1} parent=15 // pred_region
        %p358 = scmp.lt.s32.totalorder %s23, 2
        %s359 = scalar_select %p358, %s23, 2
        %s360 = smul.addr %s359, 8
        %s361 = scalar_lea.vmem %s7, %s360
      $region48: #{residual_group_forward.1} parent=15 // pred_fallthru
        _
      // Predicated region
      $region49: #{residual_group_forward.1} parent=15 // pred_check
        %p362 = pneg %p255
      $region50: #{residual_group_forward.1} parent=15 // pred_check_branch
        %364 = sbr.rel (%p362) target = $region52
      $region51: #{residual_group_forward.1} parent=15 // pred_region
        %p365 = scmp.lt.s32.totalorder %s23, 2
        %s366 = scalar_select %p365, %s23, 2
        %s367 = smul.addr %s366, 8
        %s368 = scalar_lea.vmem %s8, %s367
      $region52: #{residual_group_forward.1} parent=15 // pred_fallthru
        _
    $region16: #{residual_group_forward.1} parent=5 // pred_fallthru
      _
    %p369 = scmp.le.s32.totalorder 1, %s15
    %p370 = scmp.lt.s32.totalorder %s15, 7
    %p371 = pnand %p369, %p370
    %p372 = pneg %p371
    // Predicated region
    $region53: #{residual_group_forward.1} parent=5 // pred_check
      _
    $region54: #{residual_group_forward.1} parent=5 // pred_check_branch
      %374 = sbr.rel (%p371) target = $region56
    $region55: #{residual_group_forward.1} parent=5 // pred_region
      %s375 = ssub.s32 %s15, 1
      %p376 = scmp.lt.s32.totalorder %s24, 1
      %s377 = scalar_select %p376, %s24, 1
      %s378 = smul.addr %s377, 3
      %s379 = smul.addr %s378, 8
      %s380 = scalar_lea.vmem %s0, %s379
      %p381 = pneg %p53
      %p382 = pneg %p50
      %p383 = scmp.lt.s32.totalorder %s25, 2
      %s384 = scalar_select %p383, %s25, 2
      %s385 = smul.addr %s384, 4
      %s386 = scalar_lea.vmem %s1, %s385
      %p387 = pneg %p79
      %p388 = pneg %p76
      %p389 = scmp.lt.s32.totalorder %s25, 2
      %s390 = scalar_select %p389, %s25, 2
      %s391 = smul.addr %s390, 8
      %s392 = scalar_lea.vmem %s2, %s391
      %p393 = pneg %p105
      %p394 = pneg %p102
      %p395 = scmp.lt.s32.totalorder %s25, 2
      %s396 = scalar_select %p395, %s25, 2
      %s397 = smul.addr %s396, 4
      %s398 = scalar_lea.vmem %s3, %s397
      %p399 = pneg %p131
      %p400 = pneg %p128
      %p401 = scmp.lt.s32.totalorder %s25, 2
      %s402 = scalar_select %p401, %s25, 2
      %s403 = smul.addr %s402, 8
      %s404 = scalar_lea.vmem %s4, %s403
      %p405 = pneg %p157
      %p406 = pneg %p154
      %p407 = scmp.lt.s32.totalorder %s25, 2
      %s408 = scalar_select %p407, %s25, 2
      %s409 = smul.addr %s408, 8
      %s410 = scalar_lea.vmem %s5, %s409
      %p411 = pneg %p183
      %p412 = pneg %p180
      %p413 = scmp.lt.s32.totalorder %s25, 2
      %s414 = scalar_select %p413, %s25, 2
      %s415 = scalar_lea.vmem %s6, %s414
      %p416 = pneg %p209
      %p417 = pneg %p206
      %p418 = scmp.lt.s32.totalorder %s25, 2
      %s419 = scalar_select %p418, %s25, 2
      %s420 = smul.addr %s419, 8
      %s421 = scalar_lea.vmem %s7, %s420
      %p422 = pneg %p235
      %p423 = pneg %p232
      %p424 = scmp.lt.s32.totalorder %s25, 2
      %s425 = scalar_select %p424, %s25, 2
      %s426 = smul.addr %s425, 8
      %s427 = scalar_lea.vmem %s8, %s426
      %p428 = pneg %p261
      %p429 = pneg %p258
      %p430 = pneg %p287
      %p431 = pneg %p284
      %p432 = scmp.lt.s32.totalorder %s24, 1
      %s433 = scalar_select %p432, %s24, 1
      %s434 = smul.addr %s433, 3
      %s435 = smul.addr %s434, 8
      %s436 = scalar_lea.vmem %s9, %s435
      %p437 = scmp.lt.s32.totalorder %s24, 1
      %s438 = scalar_select %p437, %s24, 1
      %s439 = smul.addr %s438, 3
      %s440 = smul.addr %s439, 8
      %s441 = scalar_lea.vmem %s0, %s440
      %p442 = scmp.lt.s32.totalorder %s25, 2
      %s443 = scalar_select %p442, %s25, 2
      %s444 = smul.addr %s443, 4
      %s445 = scalar_lea.vmem %s1, %s444
      %p446 = scmp.lt.s32.totalorder %s25, 2
      %s447 = scalar_select %p446, %s25, 2
      %s448 = smul.addr %s447, 8
      %s449 = scalar_lea.vmem %s2, %s448
      %p450 = scmp.lt.s32.totalorder %s25, 2
      %s451 = scalar_select %p450, %s25, 2
      %s452 = smul.addr %s451, 4
      %s453 = scalar_lea.vmem %s3, %s452
      %p454 = scmp.lt.s32.totalorder %s25, 2
      %s455 = scalar_select %p454, %s25, 2
      %s456 = smul.addr %s455, 8
      %s457 = scalar_lea.vmem %s4, %s456
      %p458 = scmp.lt.s32.totalorder %s25, 2
      %s459 = scalar_select %p458, %s25, 2
      %s460 = smul.addr %s459, 8
      %s461 = scalar_lea.vmem %s5, %s460
      %p462 = scmp.lt.s32.totalorder %s25, 2
      %s463 = scalar_select %p462, %s25, 2
      %s464 = scalar_lea.vmem %s6, %s463
      %p465 = scmp.lt.s32.totalorder %s25, 2
      %s466 = scalar_select %p465, %s25, 2
      %s467 = smul.addr %s466, 8
      %s468 = scalar_lea.vmem %s7, %s467
      %p469 = scmp.lt.s32.totalorder %s25, 2
      %s470 = scalar_select %p469, %s25, 2
      %s471 = smul.addr %s470, 8
      %s472 = scalar_lea.vmem %s8, %s471
      %p473 = scmp.lt.s32.totalorder %s24, 1
      %s474 = scalar_select %p473, %s24, 1
      %s475 = smul.addr %s474, 3
      %s476 = smul.addr %s475, 8
      %s477 = scalar_lea.vmem %s9, %s476
      %v479 = vlaneseq
      %v480 = vand.u32 %v479, 127
      %v481 = vadd.s32 %v480, 128
      %v482 = vadd.s32 %v480, 256
      %vm483 = vcmp.lt.s32.totalorder %v480, 0
      %v484 = vsub.s32 0, %v480
      %v485 = vsel %vm483, %v484, %v480
      %v486 = vand.u32 %v485, 65535
      %v487 = vshrl.u32 %v485, 16
      %v489 = vmul.u32 %v486, 14564
      %v490 = vmul.u32 %v486, 58254
      %v491 = vmul.u32 %v487, 14564
      %v492 = vmul.u32 %v487, 58254
      %v493 = vshll.u32 %v490, 16
      %v494 = vshrl.u32 %v490, 16
      %v495 = vshll.u32 %v491, 16
      %v496 = vshrl.u32 %v491, 16
      %vm497 = vc.u32 %v489, %v493
      %v498 = vsel %vm497, 1, 0
      %v499 = vadd.s32 %v489, %v493
      %v500 = vadd.s32 %v492, %v498
      %vm501 = vc.u32 %v499, %v495
      %v502 = vsel %vm501, 1, 0
      %v503 = vadd.s32 %v499, %v495
      %v504 = vadd.s32 %v500, %v502
      %v505 = vadd.s32 %v504, %v494
      %v506 = vadd.s32 %v505, %v496
      %v507 = vshrl.u32 %v506, 4
      %v508 = vmul.u32 %v507, 18
      %v509 = vsub.s32 %v485, %v508
      %v510 = vsub.s32 0, %v509
      %v511 = vsel %vm483, %v510, %v509
      %vm512 = vcmp.lt.s32.totalorder %v481, 0
      %v513 = vsub.s32 0, %v481
      %v514 = vsel %vm512, %v513, %v481
      %v515 = vand.u32 %v514, 65535
      %v516 = vshrl.u32 %v514, 16
      %v518 = vmul.u32 %v515, 14564
      %v519 = vmul.u32 %v515, 58254
      %v520 = vmul.u32 %v516, 14564
      %v521 = vmul.u32 %v516, 58254
      %v522 = vshll.u32 %v519, 16
      %v523 = vshrl.u32 %v519, 16
      %v524 = vshll.u32 %v520, 16
      %v525 = vshrl.u32 %v520, 16
      %vm526 = vc.u32 %v518, %v522
      %v527 = vsel %vm526, 1, 0
      %v528 = vadd.s32 %v518, %v522
      %v529 = vadd.s32 %v521, %v527
      %vm530 = vc.u32 %v528, %v524
      %v531 = vsel %vm530, 1, 0
      %v532 = vadd.s32 %v528, %v524
      %v533 = vadd.s32 %v529, %v531
      %v534 = vadd.s32 %v533, %v523
      %v535 = vadd.s32 %v534, %v525
      %v536 = vshrl.u32 %v535, 4
      %v537 = vmul.u32 %v536, 18
      %v538 = vsub.s32 %v514, %v537
      %v539 = vsub.s32 0, %v538
      %v540 = vsel %vm512, %v539, %v538
      %vm541 = vcmp.lt.s32.totalorder %v482, 0
      %v542 = vsub.s32 0, %v482
      %v543 = vsel %vm541, %v542, %v482
      %v544 = vand.u32 %v543, 65535
      %v545 = vshrl.u32 %v543, 16
      %v547 = vmul.u32 %v544, 14564
      %v548 = vmul.u32 %v544, 58254
      %v549 = vmul.u32 %v545, 14564
      %v550 = vmul.u32 %v545, 58254
      %v551 = vshll.u32 %v548, 16
      %v552 = vshrl.u32 %v548, 16
      %v553 = vshll.u32 %v549, 16
      %v554 = vshrl.u32 %v549, 16
      %vm555 = vc.u32 %v547, %v551
      %v556 = vsel %vm555, 1, 0
      %v557 = vadd.s32 %v547, %v551
      %v558 = vadd.s32 %v550, %v556
      %vm559 = vc.u32 %v557, %v553
      %v560 = vsel %vm559, 1, 0
      %v561 = vadd.s32 %v557, %v553
      %v562 = vadd.s32 %v558, %v560
      %v563 = vadd.s32 %v562, %v552
      %v564 = vadd.s32 %v563, %v554
      %v565 = vshrl.u32 %v564, 4
      %v566 = vmul.u32 %v565, 18
      %v567 = vsub.s32 %v543, %v566
      %v568 = vsub.s32 0, %v567
      %v569 = vsel %vm541, %v568, %v567
      %vm570 = vcmp.ne.s32.totalorder %v511, 0
      %vm571 = vcmp.ne.s32.totalorder %v540, 0
      %vm572 = vcmp.ne.s32.totalorder %v569, 0
      %vm573 = vcmp.lt.s32.totalorder %v511, 0
      %vm574 = vcmp.lt.s32.totalorder %v540, 0
      %vm575 = vcmp.lt.s32.totalorder %v569, 0
      %vm576 = vmand %vm573, %vm570
      %vm577 = vmand %vm574, %vm571
      %vm578 = vmand %vm575, %vm572
      %v579 = vadd.s32 %v511, 18
      %v580 = vadd.s32 %v540, 18
      %v581 = vadd.s32 %v569, 18
      %v582 = vsel %vm576, %v579, %v511
      %v583 = vsel %vm577, %v580, %v540
      %v584 = vsel %vm578, %v581, %v569
      %vm585 = vcmp.lt.s32.totalorder %v582, 16
      %vm586 = vcmp.lt.s32.totalorder %v583, 16
      %vm587 = vcmp.lt.s32.totalorder %v584, 16
      %v588 = vsel %vm585, 1, 0
      %v589 = vsel %vm586, 1, 0
      %v590 = vsel %vm587, 1, 0
      %v591 = vcvt.s32.f32 %v588
      %v592 = vcvt.s32.f32 %v589
      %v593 = vcvt.s32.f32 %v590
      %p594 = scmp.eq.s32.totalorder %s25, 0
      // Predicated region
      $region57: #{residual_group_forward.1} parent=55 // pred_check
        %p595 = pneg %p594
      $region58: #{residual_group_forward.1} parent=55 // pred_check_branch
        %597 = sbr.rel (%p595) target = $region60
      $region59: #{residual_group_forward.1} parent=55 // pred_region
        %v598 = vld [vmem:[%s441] sm:$0xff]
        %v599 = vld [vmem:[%s441 + $0x8] sm:$0xff]
        %v600 = vld [vmem:[%s441 + $0x10] sm:$0xff]
        %601 = vst [vmem:[#allocation2] sm:$0xff] %v598
        %602 = vst [vmem:[#allocation2 + $0x8] sm:$0xff] %v599
        %vm603 = vcmask 572416
        %604 = vst.msk [vmem:[#allocation2 + $0x10] sm:$0xff] %vm603, %v600
      $region60: #{residual_group_forward.1} parent=55 // pred_fallthru
        _
      %p605 = scmp.lt.s32.totalorder %s25, 2
      // Predicated region
      $region61: #{residual_group_forward.1} parent=55 // pred_check
        %p606 = pneg %p605
      $region62: #{residual_group_forward.1} parent=55 // pred_check_branch
        %608 = sbr.rel (%p606) target = $region64
      $region63: #{residual_group_forward.1} parent=55 // pred_region
        %v609 = vld [vmem:[#allocation2] sm:$0xff]
        %v610 = vld [vmem:[#allocation2 + $0x8] sm:$0xff]
        %v611 = vld [vmem:[#allocation2 + $0x10] sm:$0xff]
        %615 = vrot.lane.b32.xlu0 %v609, 109
        %v616 = vpop.permute.xlu0 %615
        %617 = vrot.lane.b32.xlu0 %v610, 109
        %v618 = vpop.permute.xlu0 %617
        %619 = vrot.lane.b32.xlu0 %v611, 109
        %v620 = vpop.permute.xlu0 %619
        %vm621 = vcmask 891904
        %v622 = vsel %vm621, %v616, %v618
        %v623 = vsel %vm621, %v618, %v620
        %627 = vst [vmem:[#allocation4] sm:$0xff] %v622
        %628 = vst [vmem:[#allocation4 + $0x8] sm:$0xff] %v623
        %vm629 = vcmask 261120
        %630 = vst.msk [vmem:[#allocation4 + $0x10] sm:$0xff] %vm629, %v620
        %v631 = vld [vmem:[#allocation2] sm:$0xff]
        %v632 = vld [vmem:[#allocation2 + $0x8] sm:$0xff]
        %v633 = vld [vmem:[#allocation2 + $0x10] sm:$0xff]
        %634 = vst [vmem:[#allocation3] sm:$0xff] %v631
        %635 = vst [vmem:[#allocation3 + $0x8] sm:$0xff] %v632
        %636 = vst.msk [vmem:[#allocation3 + $0x10] sm:$0xff] %vm629, %v633
        %v637 = vld [vmem:[#allocation2] sm:$0xff]
        %v638 = vld [vmem:[#allocation2 + $0x8] sm:$0xff]
        %v639 = vld [vmem:[#allocation2 + $0x10] sm:$0xff]
        %643 = vrot.lane.b32.xlu0 %v637, 127
        %v644 = vpop.permute.xlu0 %643
        %645 = vrot.lane.b32.xlu0 %v638, 127
        %v646 = vpop.permute.xlu0 %645
        %647 = vrot.lane.b32.xlu0 %v639, 127
        %v648 = vpop.permute.xlu0 %647
        %vm649 = vcmask 1039360
        %v650 = vsel %vm649, %v644, %v646
        %v651 = vsel %vm649, %v646, %v648
        %655 = vst [vmem:[#allocation3 + $0x18] sm:$0xff] %v650
        %656 = vst [vmem:[#allocation3 + $0x20] sm:$0xff] %v651
        %657 = vst.msk [vmem:[#allocation3 + $0x28] sm:$0xff] %vm629, %v648
        %v658 = vld [vmem:[#allocation2] sm:$0xff]
        %v659 = vld [vmem:[#allocation2 + $0x8] sm:$0xff]
        %v660 = vld [vmem:[#allocation2 + $0x10] sm:$0xff]
        %664 = vrot.lane.b32.xlu0 %v658, 126
        %v665 = vpop.permute.xlu0 %664
        %666 = vrot.lane.b32.xlu0 %v659, 126
        %v667 = vpop.permute.xlu0 %666
        %668 = vrot.lane.b32.xlu0 %v660, 126
        %v669 = vpop.permute.xlu0 %668
        %vm670 = vcmask 1031168
        %v671 = vsel %vm670, %v665, %v667
        %v672 = vsel %vm670, %v667, %v669
        %676 = vst [vmem:[#allocation3 + $0x30] sm:$0xff] %v671
        %677 = vst [vmem:[#allocation3 + $0x38] sm:$0xff] %v672
        %678 = vst.msk [vmem:[#allocation3 + $0x40] sm:$0xff] %vm629, %v669
        %v679 = vld [vmem:[#allocation2] sm:$0xff]
        %v680 = vld [vmem:[#allocation2 + $0x8] sm:$0xff]
        %v681 = vld [vmem:[#allocation2 + $0x10] sm:$0xff]
        %685 = vrot.lane.b32.xlu0 %v679, 110
        %v686 = vpop.permute.xlu0 %685
        %687 = vrot.lane.b32.xlu0 %v680, 110
        %v688 = vpop.permute.xlu0 %687
        %689 = vrot.lane.b32.xlu0 %v681, 110
        %v690 = vpop.permute.xlu0 %689
        %vm691 = vcmask 900096
        %v692 = vsel %vm691, %v686, %v688
        %v693 = vsel %vm691, %v688, %v690
        %697 = vst [vmem:[#allocation3 + $0x48] sm:$0xff] %v692
        %698 = vst [vmem:[#allocation3 + $0x50] sm:$0xff] %v693
        %699 = vst.msk [vmem:[#allocation3 + $0x58] sm:$0xff] %vm629, %v690
        %v700 = vld [vmem:[#allocation2] sm:$0xff]
        %v701 = vld [vmem:[#allocation2 + $0x8] sm:$0xff]
        %v702 = vld [vmem:[#allocation2 + $0x10] sm:$0xff]
        %706 = vrot.lane.b32.xlu0 %v700, 109
        %v707 = vpop.permute.xlu0 %706
        %708 = vrot.lane.b32.xlu0 %v701, 109
        %v709 = vpop.permute.xlu0 %708
        %710 = vrot.lane.b32.xlu0 %v702, 109
        %v711 = vpop.permute.xlu0 %710
        %v712 = vsel %vm621, %v707, %v709
        %v713 = vsel %vm621, %v709, %v711
        %717 = vst [vmem:[#allocation3 + $0x60] sm:$0xff] %v712
        %718 = vst [vmem:[#allocation3 + $0x68] sm:$0xff] %v713
        %719 = vst.msk [vmem:[#allocation3 + $0x70] sm:$0xff] %vm629, %v711
        %v720 = vld [vmem:[#allocation2] sm:$0xff]
        %v721 = vld [vmem:[#allocation2 + $0x8] sm:$0xff]
        %v722 = vld [vmem:[#allocation2 + $0x10] sm:$0xff]
        %726 = vrot.lane.b32.xlu0 %v720, 108
        %v727 = vpop.permute.xlu0 %726
        %728 = vrot.lane.b32.xlu0 %v721, 108
        %v729 = vpop.permute.xlu0 %728
        %730 = vrot.lane.b32.xlu0 %v722, 108
        %v731 = vpop.permute.xlu0 %730
        %vm732 = vcmask 883712
        %v733 = vsel %vm732, %v727, %v729
        %v734 = vsel %vm732, %v729, %v731
        %738 = vst [vmem:[#allocation3 + $0x78] sm:$0xff] %v733
        %739 = vst [vmem:[#allocation3 + $0x80] sm:$0xff] %v734
        %740 = vst.msk [vmem:[#allocation3 + $0x88] sm:$0xff] %vm629, %v731
        %v741 = vld [vmem:[#allocation2] sm:$0xff]
        %v742 = vld [vmem:[#allocation2 + $0x8] sm:$0xff]
        %v743 = vld [vmem:[#allocation2 + $0x10] sm:$0xff]
        %747 = vrot.lane.b32.xlu0 %v741, 92
        %v748 = vpop.permute.xlu0 %747
        %749 = vrot.lane.b32.xlu0 %v742, 92
        %v750 = vpop.permute.xlu0 %749
        %751 = vrot.lane.b32.xlu0 %v743, 92
        %v752 = vpop.permute.xlu0 %751
        %vm753 = vcmask 752640
        %v754 = vsel %vm753, %v748, %v750
        %v755 = vsel %vm753, %v750, %v752
        %759 = vst [vmem:[#allocation3 + $0x90] sm:$0xff] %v754
        %760 = vst [vmem:[#allocation3 + $0x98] sm:$0xff] %v755
        %761 = vst.msk [vmem:[#allocation3 + $0xa0] sm:$0xff] %vm629, %v752
        %v762 = vld [vmem:[#allocation2] sm:$0xff]
        %v763 = vld [vmem:[#allocation2 + $0x8] sm:$0xff]
        %v764 = vld [vmem:[#allocation2 + $0x10] sm:$0xff]
        %768 = vrot.lane.b32.xlu0 %v762, 91
        %v769 = vpop.permute.xlu0 %768
        %770 = vrot.lane.b32.xlu0 %v763, 91
        %v771 = vpop.permute.xlu0 %770
        %772 = vrot.lane.b32.xlu0 %v764, 91
        %v773 = vpop.permute.xlu0 %772
        %vm774 = vcmask 744448
        %v775 = vsel %vm774, %v769, %v771
        %v776 = vsel %vm774, %v771, %v773
        %780 = vst [vmem:[#allocation3 + $0xa8] sm:$0xff] %v775
        %781 = vst [vmem:[#allocation3 + $0xb0] sm:$0xff] %v776
        %782 = vst.msk [vmem:[#allocation3 + $0xb8] sm:$0xff] %vm629, %v773
        %v783 = vld [vmem:[#allocation2] sm:$0xff]
        %v784 = vld [vmem:[#allocation2 + $0x8] sm:$0xff]
        %v785 = vld [vmem:[#allocation2 + $0x10] sm:$0xff]
        %789 = vrot.lane.b32.xlu0 %v783, 90
        %v790 = vpop.permute.xlu0 %789
        %791 = vrot.lane.b32.xlu0 %v784, 90
        %v792 = vpop.permute.xlu0 %791
        %793 = vrot.lane.b32.xlu0 %v785, 90
        %v794 = vpop.permute.xlu0 %793
        %vm795 = vcmask 736256
        %v796 = vsel %vm795, %v790, %v792
        %v797 = vsel %vm795, %v792, %v794
        %801 = vst [vmem:[#allocation3 + $0xc0] sm:$0xff] %v796
        %802 = vst [vmem:[#allocation3 + $0xc8] sm:$0xff] %v797
        %803 = vst.msk [vmem:[#allocation3 + $0xd0] sm:$0xff] %vm629, %v794
        %v804 = vld [vmem:[#allocation3] sm:$0xff]
        %v805 = vld [vmem:[#allocation3 + $0x8] sm:$0xff]
        %v806 = vld [vmem:[#allocation3 + $0x10] sm:$0xff]
        %v807 = vld [vmem:[#allocation3 + $0x18] sm:$0xff]
        %v808 = vld [vmem:[#allocation3 + $0x20] sm:$0xff]
        %v809 = vld [vmem:[#allocation3 + $0x28] sm:$0xff]
        %v810 = vld [vmem:[#allocation3 + $0x30] sm:$0xff]
        %v811 = vld [vmem:[#allocation3 + $0x38] sm:$0xff]
        %v812 = vld [vmem:[#allocation3 + $0x40] sm:$0xff]
        %v813 = vld [vmem:[#allocation3 + $0x48] sm:$0xff]
        %v814 = vld [vmem:[#allocation3 + $0x50] sm:$0xff]
        %v815 = vld [vmem:[#allocation3 + $0x58] sm:$0xff]
        %v816 = vld [vmem:[#allocation3 + $0x60] sm:$0xff]
        %v817 = vld [vmem:[#allocation3 + $0x68] sm:$0xff]
        %v818 = vld [vmem:[#allocation3 + $0x70] sm:$0xff]
        %v819 = vld [vmem:[#allocation3 + $0x78] sm:$0xff]
        %v820 = vld [vmem:[#allocation3 + $0x80] sm:$0xff]
        %v821 = vld [vmem:[#allocation3 + $0x88] sm:$0xff]
        %v822 = vld [vmem:[#allocation3 + $0x90] sm:$0xff]
        %v823 = vld [vmem:[#allocation3 + $0x98] sm:$0xff]
        %v824 = vld [vmem:[#allocation3 + $0xa0] sm:$0xff]
        %v825 = vld [vmem:[#allocation3 + $0xa8] sm:$0xff]
        %v826 = vld [vmem:[#allocation3 + $0xb0] sm:$0xff]
        %v827 = vld [vmem:[#allocation3 + $0xb8] sm:$0xff]
        %v828 = vld [vmem:[#allocation3 + $0xc0] sm:$0xff]
        %v829 = vld [vmem:[#allocation3 + $0xc8] sm:$0xff]
        %v830 = vld [vmem:[#allocation3 + $0xd0] sm:$0xff]
        %v831 = vpack.c.bf16 %v807, %v804
        %v832 = vpack.c.bf16 %v808, %v805
        %v833 = vpack.c.bf16 %v809, %v806
        %v834 = vpack.c.bf16 %v813, %v810
        %v835 = vpack.c.bf16 %v814, %v811
        %v836 = vpack.c.bf16 %v815, %v812
        %v837 = vpack.c.bf16 %v819, %v816
        %v838 = vpack.c.bf16 %v820, %v817
        %v839 = vpack.c.bf16 %v821, %v818
        %v840 = vpack.c.bf16 %v825, %v822
        %v841 = vpack.c.bf16 %v826, %v823
        %v842 = vpack.c.bf16 %v827, %v824
        %v843 = vpack.c.bf16 %v828, %v828
        %v844 = vpack.c.bf16 %v829, %v829
        %v845 = vpack.c.bf16 %v830, %v830
        %v846 = vld [vmem:[%s445] sm:$0xf]
        %v847 = vld [vmem:[%s449] sm:$0xff]
        %849 = vset.pattern.permute.xlu0 0
        %850 = vperm.xlu0 %849, %v847
        %v851 = vpop.permute.xlu0 %850
        %vm853 = vcmask 588800
        %v855 = vsel %vm853, %v846, 0
        %vm857 = vcmask 1043456
        %v859 = vsel %vm857, %v843, 0
        %v862 = vsel %vm857, %v844, 0
        %v865 = vsel %vm857, %v845, 0
        %867 = vmatpush.bf16.msra.mxu0 0
        %868 = vmatpush.bf16.msra.mxu0 0
        %869 = vmatpush.bf16.msra.mxu0 0
        %870 = vmatpush.bf16.msra.mxu0 %v859
        %871 = vmatpush.bf16.msra.mxu0 %v840
        %872 = vmatpush.bf16.msra.mxu0 %v837
        %873 = vmatpush.bf16.msra.mxu0 %v834
        %874 = vmatpush.bf16.msra.mxu0 %v831
        %875 = vmatmul.bf16.gmra.mxu0 %v855
        %v876 = vpop.f32.mrf.mxu0
        %v877 = vadd.f32 %v851, %v876
        %v878 = vpop.f32.mrf.mxu0
        %879 = vdwg.mxu0
        %880 = vmatpush.bf16.msra.mxu0 0
        %881 = vmatpush.bf16.msra.mxu0 0
        %882 = vmatpush.bf16.msra.mxu0 0
        %883 = vmatpush.bf16.msra.mxu0 %v862
        %884 = vmatpush.bf16.msra.mxu0 %v841
        %885 = vmatpush.bf16.msra.mxu0 %v838
        %886 = vmatpush.bf16.msra.mxu0 %v835
        %887 = vmatpush.bf16.msra.mxu0 %v832
        %888 = vmatmul.bf16.gmra.mxu0 %v855
        %v889 = vpop.f32.mrf.mxu0
        %v890 = vadd.f32 %v851, %v889
        %v891 = vpop.f32.mrf.mxu0
        %892 = vdwg.mxu0
        %893 = vmatpush.bf16.msra.mxu0 0
        %894 = vmatpush.bf16.msra.mxu0 0
        %895 = vmatpush.bf16.msra.mxu0 0
        %896 = vmatpush.bf16.msra.mxu0 %v865
        %897 = vmatpush.bf16.msra.mxu0 %v842
        %898 = vmatpush.bf16.msra.mxu0 %v839
        %899 = vmatpush.bf16.msra.mxu0 %v836
        %900 = vmatpush.bf16.msra.mxu0 %v833
        %901 = vmatmul.bf16.gmra.mxu0 %v855
        %v902 = vpop.f32.mrf.mxu0
        %v903 = vadd.f32 %v851, %v902
        %v904 = vpop.f32.mrf.mxu0
        %905 = vdwg.mxu0
        %v906 = vmax.f32 %v877, 0.0
        %v907 = vmax.f32 %v890, 0.0
        %v908 = vmax.f32 %v903, 0.0
        %v909 = vmul.f32 %v906, %v591
        %v910 = vmul.f32 %v907, %v592
        %v911 = vmul.f32 %v908, %v593
        %915 = vrot.lane.b32.xlu0 %v909, 19
        %v916 = vpop.permute.xlu0 %915
        %917 = vrot.lane.b32.xlu0 %v910, 19
        %v918 = vpop.permute.xlu0 %917
        %919 = vrot.lane.b32.xlu0 %v911, 19
        %v920 = vpop.permute.xlu0 %919
        %vm921 = vcmask 154624
        %v922 = vsel %vm921, %v916, %v918
        %v923 = vsel %vm921, %v918, %v920
        %vm927 = vcmask 1047704
        %928 = vst.msk [vmem:[#allocation2] sm:$0xff] %vm927, %v916
        %929 = vst [vmem:[#allocation2 + $0x8] sm:$0xff] %v922
        %vm930 = vcmask 416768
        %931 = vst.msk [vmem:[#allocation2 + $0x10] sm:$0xff] %vm930, %v923
        %v932 = vld [vmem:[#allocation2] sm:$0xff]
        %v933 = vld [vmem:[#allocation2 + $0x8] sm:$0xff]
        %v934 = vld [vmem:[#allocation2 + $0x10] sm:$0xff]
        %935 = vst [vmem:[#allocation3] sm:$0xff] %v932
        %936 = vst [vmem:[#allocation3 + $0x8] sm:$0xff] %v933
        %937 = vst.msk [vmem:[#allocation3 + $0x10] sm:$0xff] %vm629, %v934
        %v938 = vld [vmem:[#allocation2] sm:$0xff]
        %v939 = vld [vmem:[#allocation2 + $0x8] sm:$0xff]
        %v940 = vld [vmem:[#allocation2 + $0x10] sm:$0xff]
        %944 = vrot.lane.b32.xlu0 %v938, 127
        %v945 = vpop.permute.xlu0 %944
        %946 = vrot.lane.b32.xlu0 %v939, 127
        %v947 = vpop.permute.xlu0 %946
        %948 = vrot.lane.b32.xlu0 %v940, 127
        %v949 = vpop.permute.xlu0 %948
        %v950 = vsel %vm649, %v945, %v947
        %v951 = vsel %vm649, %v947, %v949
        %955 = vst [vmem:[#allocation3 + $0x18] sm:$0xff] %v950
        %956 = vst [vmem:[#allocation3 + $0x20] sm:$0xff] %v951
        %957 = vst.msk [vmem:[#allocation3 + $0x28] sm:$0xff] %vm629, %v949
        %v958 = vld [vmem:[#allocation2] sm:$0xff]
        %v959 = vld [vmem:[#allocation2 + $0x8] sm:$0xff]
        %v960 = vld [vmem:[#allocation2 + $0x10] sm:$0xff]
        %964 = vrot.lane.b32.xlu0 %v958, 126
        %v965 = vpop.permute.xlu0 %964
        %966 = vrot.lane.b32.xlu0 %v959, 126
        %v967 = vpop.permute.xlu0 %966
        %968 = vrot.lane.b32.xlu0 %v960, 126
        %v969 = vpop.permute.xlu0 %968
        %v970 = vsel %vm670, %v965, %v967
        %v971 = vsel %vm670, %v967, %v969
        %975 = vst [vmem:[#allocation3 + $0x30] sm:$0xff] %v970
        %976 = vst [vmem:[#allocation3 + $0x38] sm:$0xff] %v971
        %977 = vst.msk [vmem:[#allocation3 + $0x40] sm:$0xff] %vm629, %v969
        %v978 = vld [vmem:[#allocation2] sm:$0xff]
        %v979 = vld [vmem:[#allocation2 + $0x8] sm:$0xff]
        %v980 = vld [vmem:[#allocation2 + $0x10] sm:$0xff]
        %984 = vrot.lane.b32.xlu0 %v978, 110
        %v985 = vpop.permute.xlu0 %984
        %986 = vrot.lane.b32.xlu0 %v979, 110
        %v987 = vpop.permute.xlu0 %986
        %988 = vrot.lane.b32.xlu0 %v980, 110
        %v989 = vpop.permute.xlu0 %988
        %v990 = vsel %vm691, %v985, %v987
        %v991 = vsel %vm691, %v987, %v989
        %995 = vst [vmem:[#allocation3 + $0x48] sm:$0xff] %v990
        %996 = vst [vmem:[#allocation3 + $0x50] sm:$0xff] %v991
        %997 = vst.msk [vmem:[#allocation3 + $0x58] sm:$0xff] %vm629, %v989
        %v998 = vld [vmem:[#allocation2] sm:$0xff]
        %v999 = vld [vmem:[#allocation2 + $0x8] sm:$0xff]
        %v1000 = vld [vmem:[#allocation2 + $0x10] sm:$0xff]
        %1004 = vrot.lane.b32.xlu0 %v998, 109
        %v1005 = vpop.permute.xlu0 %1004
        %1006 = vrot.lane.b32.xlu0 %v999, 109
        %v1007 = vpop.permute.xlu0 %1006
        %1008 = vrot.lane.b32.xlu0 %v1000, 109
        %v1009 = vpop.permute.xlu0 %1008
        %v1010 = vsel %vm621, %v1005, %v1007
        %v1011 = vsel %vm621, %v1007, %v1009
        %1015 = vst [vmem:[#allocation3 + $0x60] sm:$0xff] %v1010
        %1016 = vst [vmem:[#allocation3 + $0x68] sm:$0xff] %v1011
        %1017 = vst.msk [vmem:[#allocation3 + $0x70] sm:$0xff] %vm629, %v1009
        %v1018 = vld [vmem:[#allocation2] sm:$0xff]
        %v1019 = vld [vmem:[#allocation2 + $0x8] sm:$0xff]
        %v1020 = vld [vmem:[#allocation2 + $0x10] sm:$0xff]
        %1024 = vrot.lane.b32.xlu0 %v1018, 108
        %v1025 = vpop.permute.xlu0 %1024
        %1026 = vrot.lane.b32.xlu0 %v1019, 108
        %v1027 = vpop.permute.xlu0 %1026
        %1028 = vrot.lane.b32.xlu0 %v1020, 108
        %v1029 = vpop.permute.xlu0 %1028
        %v1030 = vsel %vm732, %v1025, %v1027
        %v1031 = vsel %vm732, %v1027, %v1029
        %1035 = vst [vmem:[#allocation3 + $0x78] sm:$0xff] %v1030
        %1036 = vst [vmem:[#allocation3 + $0x80] sm:$0xff] %v1031
        %1037 = vst.msk [vmem:[#allocation3 + $0x88] sm:$0xff] %vm629, %v1029
        %v1038 = vld [vmem:[#allocation2] sm:$0xff]
        %v1039 = vld [vmem:[#allocation2 + $0x8] sm:$0xff]
        %v1040 = vld [vmem:[#allocation2 + $0x10] sm:$0xff]
        %1044 = vrot.lane.b32.xlu0 %v1038, 92
        %v1045 = vpop.permute.xlu0 %1044
        %1046 = vrot.lane.b32.xlu0 %v1039, 92
        %v1047 = vpop.permute.xlu0 %1046
        %1048 = vrot.lane.b32.xlu0 %v1040, 92
        %v1049 = vpop.permute.xlu0 %1048
        %v1050 = vsel %vm753, %v1045, %v1047
        %v1051 = vsel %vm753, %v1047, %v1049
        %1055 = vst [vmem:[#allocation3 + $0x90] sm:$0xff] %v1050
        %1056 = vst [vmem:[#allocation3 + $0x98] sm:$0xff] %v1051
        %1057 = vst.msk [vmem:[#allocation3 + $0xa0] sm:$0xff] %vm629, %v1049
        %v1058 = vld [vmem:[#allocation2] sm:$0xff]
        %v1059 = vld [vmem:[#allocation2 + $0x8] sm:$0xff]
        %v1060 = vld [vmem:[#allocation2 + $0x10] sm:$0xff]
        %1064 = vrot.lane.b32.xlu0 %v1058, 91
        %v1065 = vpop.permute.xlu0 %1064
        %1066 = vrot.lane.b32.xlu0 %v1059, 91
        %v1067 = vpop.permute.xlu0 %1066
        %1068 = vrot.lane.b32.xlu0 %v1060, 91
        %v1069 = vpop.permute.xlu0 %1068
        %v1070 = vsel %vm774, %v1065, %v1067
        %v1071 = vsel %vm774, %v1067, %v1069
        %1075 = vst [vmem:[#allocation3 + $0xa8] sm:$0xff] %v1070
        %1076 = vst [vmem:[#allocation3 + $0xb0] sm:$0xff] %v1071
        %1077 = vst.msk [vmem:[#allocation3 + $0xb8] sm:$0xff] %vm629, %v1069
        %v1078 = vld [vmem:[#allocation2] sm:$0xff]
        %v1079 = vld [vmem:[#allocation2 + $0x8] sm:$0xff]
        %v1080 = vld [vmem:[#allocation2 + $0x10] sm:$0xff]
        %1084 = vrot.lane.b32.xlu0 %v1078, 90
        %v1085 = vpop.permute.xlu0 %1084
        %1086 = vrot.lane.b32.xlu0 %v1079, 90
        %v1087 = vpop.permute.xlu0 %1086
        %1088 = vrot.lane.b32.xlu0 %v1080, 90
        %v1089 = vpop.permute.xlu0 %1088
        %v1090 = vsel %vm795, %v1085, %v1087
        %v1091 = vsel %vm795, %v1087, %v1089
        %1095 = vst [vmem:[#allocation3 + $0xc0] sm:$0xff] %v1090
        %1096 = vst [vmem:[#allocation3 + $0xc8] sm:$0xff] %v1091
        %1097 = vst.msk [vmem:[#allocation3 + $0xd0] sm:$0xff] %vm629, %v1089
        %v1098 = vld [vmem:[#allocation3] sm:$0xff]
        %v1099 = vld [vmem:[#allocation3 + $0x8] sm:$0xff]
        %v1100 = vld [vmem:[#allocation3 + $0x10] sm:$0xff]
        %v1101 = vld [vmem:[#allocation3 + $0x18] sm:$0xff]
        %v1102 = vld [vmem:[#allocation3 + $0x20] sm:$0xff]
        %v1103 = vld [vmem:[#allocation3 + $0x28] sm:$0xff]
        %v1104 = vld [vmem:[#allocation3 + $0x30] sm:$0xff]
        %v1105 = vld [vmem:[#allocation3 + $0x38] sm:$0xff]
        %v1106 = vld [vmem:[#allocation3 + $0x40] sm:$0xff]
        %v1107 = vld [vmem:[#allocation3 + $0x48] sm:$0xff]
        %v1108 = vld [vmem:[#allocation3 + $0x50] sm:$0xff]
        %v1109 = vld [vmem:[#allocation3 + $0x58] sm:$0xff]
        %v1110 = vld [vmem:[#allocation3 + $0x60] sm:$0xff]
        %v1111 = vld [vmem:[#allocation3 + $0x68] sm:$0xff]
        %v1112 = vld [vmem:[#allocation3 + $0x70] sm:$0xff]
        %v1113 = vld [vmem:[#allocation3 + $0x78] sm:$0xff]
        %v1114 = vld [vmem:[#allocation3 + $0x80] sm:$0xff]
        %v1115 = vld [vmem:[#allocation3 + $0x88] sm:$0xff]
        %v1116 = vld [vmem:[#allocation3 + $0x90] sm:$0xff]
        %v1117 = vld [vmem:[#allocation3 + $0x98] sm:$0xff]
        %v1118 = vld [vmem:[#allocation3 + $0xa0] sm:$0xff]
        %v1119 = vld [vmem:[#allocation3 + $0xa8] sm:$0xff]
        %v1120 = vld [vmem:[#allocation3 + $0xb0] sm:$0xff]
        %v1121 = vld [vmem:[#allocation3 + $0xb8] sm:$0xff]
        %v1122 = vld [vmem:[#allocation3 + $0xc0] sm:$0xff]
        %v1123 = vld [vmem:[#allocation3 + $0xc8] sm:$0xff]
        %v1124 = vld [vmem:[#allocation3 + $0xd0] sm:$0xff]
        %v1125 = vpack.c.bf16 %v1101, %v1098
        %v1126 = vpack.c.bf16 %v1102, %v1099
        %v1127 = vpack.c.bf16 %v1103, %v1100
        %v1128 = vpack.c.bf16 %v1107, %v1104
        %v1129 = vpack.c.bf16 %v1108, %v1105
        %v1130 = vpack.c.bf16 %v1109, %v1106
        %v1131 = vpack.c.bf16 %v1113, %v1110
        %v1132 = vpack.c.bf16 %v1114, %v1111
        %v1133 = vpack.c.bf16 %v1115, %v1112
        %v1134 = vpack.c.bf16 %v1119, %v1116
        %v1135 = vpack.c.bf16 %v1120, %v1117
        %v1136 = vpack.c.bf16 %v1121, %v1118
        %v1137 = vpack.c.bf16 %v1122, %v1122
        %v1138 = vpack.c.bf16 %v1123, %v1123
        %v1139 = vpack.c.bf16 %v1124, %v1124
        %v1140 = vld [vmem:[%s453] sm:$0xf]
        %v1141 = vld [vmem:[%s457] sm:$0xff]
        %1143 = vset.pattern.permute.xlu0 0
        %1144 = vperm.xlu0 %1143, %v1141
        %v1145 = vpop.permute.xlu0 %1144
        %v1148 = vsel %vm853, %v1140, 0
        %v1151 = vsel %vm857, %v1137, 0
        %v1154 = vsel %vm857, %v1138, 0
        %v1157 = vsel %vm857, %v1139, 0
        %1159 = vmatpush.bf16.msra.mxu0 0
        %1160 = vmatpush.bf16.msra.mxu0 0
        %1161 = vmatpush.bf16.msra.mxu0 0
        %1162 = vmatpush.bf16.msra.mxu0 %v1151
        %1163 = vmatpush.bf16.msra.mxu0 %v1134
        %1164 = vmatpush.bf16.msra.mxu0 %v1131
        %1165 = vmatpush.bf16.msra.mxu0 %v1128
        %1166 = vmatpush.bf16.msra.mxu0 %v1125
        %1167 = vmatmul.bf16.gmra.mxu0 %v1148
        %v1168 = vpop.f32.mrf.mxu0
        %v1169 = vadd.f32 %v1145, %v1168
        %v1170 = vpop.f32.mrf.mxu0
        %1171 = vdwg.mxu0
        %1172 = vmatpush.bf16.msra.mxu0 0
        %1173 = vmatpush.bf16.msra.mxu0 0
        %1174 = vmatpush.bf16.msra.mxu0 0
        %1175 = vmatpush.bf16.msra.mxu0 %v1154
        %1176 = vmatpush.bf16.msra.mxu0 %v1135
        %1177 = vmatpush.bf16.msra.mxu0 %v1132
        %1178 = vmatpush.bf16.msra.mxu0 %v1129
        %1179 = vmatpush.bf16.msra.mxu0 %v1126
        %1180 = vmatmul.bf16.gmra.mxu0 %v1148
        %v1181 = vpop.f32.mrf.mxu0
        %v1182 = vadd.f32 %v1145, %v1181
        %v1183 = vpop.f32.mrf.mxu0
        %1184 = vdwg.mxu0
        %1185 = vmatpush.bf16.msra.mxu0 0
        %1186 = vmatpush.bf16.msra.mxu0 0
        %1187 = vmatpush.bf16.msra.mxu0 0
        %1188 = vmatpush.bf16.msra.mxu0 %v1157
        %1189 = vmatpush.bf16.msra.mxu0 %v1136
        %1190 = vmatpush.bf16.msra.mxu0 %v1133
        %1191 = vmatpush.bf16.msra.mxu0 %v1130
        %1192 = vmatpush.bf16.msra.mxu0 %v1127
        %1193 = vmatmul.bf16.gmra.mxu0 %v1148
        %v1194 = vpop.f32.mrf.mxu0
        %v1195 = vadd.f32 %v1145, %v1194
        %v1196 = vpop.f32.mrf.mxu0
        %1197 = vdwg.mxu0
        %v1198 = vmul.f32 %v1169, %v591
        %v1199 = vmul.f32 %v1182, %v592
        %v1200 = vmul.f32 %v1195, %v593
        %v1201 = vadd.f32 %v1198, %v1199
        %v1202 = vsel %vm629, %v1200, 0.0
        %v1203 = vadd.f32 %v1201, %v1202
        %1204 = vadd.xlane.f32.xlu0 %v1203
        %v1205 = vpop.xlane.xlu0 %1204
        %v1206 = vmul.f32 %v1205, 0.00390625
        %v1207 = vld [vmem:[%s461] sm:$0xff]
        %v1208 = vmul.f32 %v1207, %v1206
        %vm1209 = vcmask 15360
        %v1210 = vsel %vm1209, %v1208, 0.0
        %v1211 = vrot.slane %v1210, 4
        %v1212 = vadd.f32 %v1210, %v1211
        %v1213 = vrot.slane %v1212, 2
        %v1214 = vadd.f32 %v1212, %v1213
        %v1215 = vrot.slane %v1214, 1
        %v1216 = vadd.f32 %v1214, %v1215
        %v1217 = vld [vmem:[%s464] sm:$0x1]
        %v1218 = vadd.f32 %v1216, %v1217
        %v1219 = vmax.f32 %v1218, 0.0
        %v1220 = vld [vmem:[%s468] sm:$0xff]
        %v1221 = vperm.slane %v1219, 0
        %v1222 = vmul.f32 %v1220, %v1221
        %v1223 = vsel %vm1209, %v1222, 0.0
        %1224 = vadd.xlane.f32.xlu0 %v1223
        %v1225 = vpop.xlane.xlu0 %1224
        %v1226 = vld [vmem:[%s472] sm:$0xff]
        %v1227 = vadd.f32 %v1225, %v1226
        %v1228 = vxor.u32 %v1227, 2147483648
        %v1229 = vmul.f32 %v1228, 1.442695
        %v1230 = vpow.pop %v1229
        %v1231 = vadd.f32 %v1230, 1.0
        %v1232 = vrcp.pop %v1231
        %v1233 = vmul.f32 %v1231, %v1232
        %v1234 = vsub.f32 1.0, %v1233
        %v1235 = vmul.f32 %v1232, %v1234
        %v1236 = vadd.f32 %v1232, %v1235
        %vm1237 = vweird.f32 %v1231
        %vm1238 = vweird.f32 %v1232
        %vm1239 = vmor %vm1237, %vm1238
        %v1240 = vsel %vm1239, %v1232, %v1236
        %v1241 = vand.u32 2147483647, %v1231
        %vm1242 = vcmp.eq.f32.partialorder %v1241, 8.507059e+37
        %v1243 = vand.u32 %v1231, 2147483648
        %v1244 = vor.u32 1.1754944e-38, %v1243
        %v1245 = vsel %vm1242, %v1244, %v1240
        %v1246 = vmul.f32 1.0, %v1245
        %1248 = vset.pattern.permute.xlu0 0
        %1249 = vperm.xlu0 %1248, %v1246
        %v1250 = vpop.permute.xlu0 %1249
        %v1252 = vmul.f32 %v1169, %v1250
        %v1253 = vmul.f32 %v1182, %v1250
        %v1254 = vmul.f32 %v1195, %v1250
        %v1255 = vld [vmem:[#allocation4] sm:$0xff]
        %v1256 = vld [vmem:[#allocation4 + $0x8] sm:$0xff]
        %v1257 = vld [vmem:[#allocation4 + $0x10] sm:$0xff]
        %v1258 = vadd.f32 %v1252, %v1255
        %v1259 = vadd.f32 %v1253, %v1256
        %v1260 = vadd.f32 %v1254, %v1257
        %v1261 = vmul.f32 %v1258, %v591
        %v1262 = vmul.f32 %v1259, %v592
        %v1263 = vmul.f32 %v1260, %v593
        %1267 = vrot.lane.b32.xlu0 %v1261, 19
        %v1268 = vpop.permute.xlu0 %1267
        %1269 = vrot.lane.b32.xlu0 %v1262, 19
        %v1270 = vpop.permute.xlu0 %1269
        %1271 = vrot.lane.b32.xlu0 %v1263, 19
        %v1272 = vpop.permute.xlu0 %1271
        %v1273 = vsel %vm921, %v1268, %v1270
        %v1274 = vsel %vm921, %v1270, %v1272
        %1278 = vst.msk [vmem:[#allocation2] sm:$0xff] %vm927, %v1268
        %1279 = vst [vmem:[#allocation2 + $0x8] sm:$0xff] %v1273
        %1280 = vst.msk [vmem:[#allocation2 + $0x10] sm:$0xff] %vm930, %v1274
      $region64: #{residual_group_forward.1} parent=55 // pred_fallthru
        _
      %p1281 = scmp.eq.s32.totalorder %s25, 2
      // Predicated region
      $region65: #{residual_group_forward.1} parent=55 // pred_check
        %p1282 = pneg %p1281
      $region66: #{residual_group_forward.1} parent=55 // pred_check_branch
        %1284 = sbr.rel (%p1282) target = $region68
      $region67: #{residual_group_forward.1} parent=55 // pred_region
        %v1285 = vld [vmem:[#allocation2] sm:$0xff]
        %v1286 = vld [vmem:[#allocation2 + $0x8] sm:$0xff]
        %v1287 = vld [vmem:[#allocation2 + $0x10] sm:$0xff]
        %1288 = vst [vmem:[#allocation3] sm:$0xff] %v1285
        %1289 = vst [vmem:[#allocation3 + $0x8] sm:$0xff] %v1286
        %vm1290 = vcmask 261120
        %1291 = vst.msk [vmem:[#allocation3 + $0x10] sm:$0xff] %vm1290, %v1287
        %v1292 = vld [vmem:[#allocation2] sm:$0xff]
        %v1293 = vld [vmem:[#allocation2 + $0x8] sm:$0xff]
        %v1294 = vld [vmem:[#allocation2 + $0x10] sm:$0xff]
        %1298 = vrot.lane.b32.xlu0 %v1292, 127
        %v1299 = vpop.permute.xlu0 %1298
        %1300 = vrot.lane.b32.xlu0 %v1293, 127
        %v1301 = vpop.permute.xlu0 %1300
        %1302 = vrot.lane.b32.xlu0 %v1294, 127
        %v1303 = vpop.permute.xlu0 %1302
        %vm1304 = vcmask 1039360
        %v1305 = vsel %vm1304, %v1299, %v1301
        %v1306 = vsel %vm1304, %v1301, %v1303
        %1310 = vst [vmem:[#allocation3 + $0x18] sm:$0xff] %v1305
        %1311 = vst [vmem:[#allocation3 + $0x20] sm:$0xff] %v1306
        %1312 = vst.msk [vmem:[#allocation3 + $0x28] sm:$0xff] %vm1290, %v1303
        %v1313 = vld [vmem:[#allocation2] sm:$0xff]
        %v1314 = vld [vmem:[#allocation2 + $0x8] sm:$0xff]
        %v1315 = vld [vmem:[#allocation2 + $0x10] sm:$0xff]
        %1319 = vrot.lane.b32.xlu0 %v1313, 126
        %v1320 = vpop.permute.xlu0 %1319
        %1321 = vrot.lane.b32.xlu0 %v1314, 126
        %v1322 = vpop.permute.xlu0 %1321
        %1323 = vrot.lane.b32.xlu0 %v1315, 126
        %v1324 = vpop.permute.xlu0 %1323
        %vm1325 = vcmask 1031168
        %v1326 = vsel %vm1325, %v1320, %v1322
        %v1327 = vsel %vm1325, %v1322, %v1324
        %1331 = vst [vmem:[#allocation3 + $0x30] sm:$0xff] %v1326
        %1332 = vst [vmem:[#allocation3 + $0x38] sm:$0xff] %v1327
        %1333 = vst.msk [vmem:[#allocation3 + $0x40] sm:$0xff] %vm1290, %v1324
        %v1334 = vld [vmem:[#allocation2] sm:$0xff]
        %v1335 = vld [vmem:[#allocation2 + $0x8] sm:$0xff]
        %v1336 = vld [vmem:[#allocation2 + $0x10] sm:$0xff]
        %1340 = vrot.lane.b32.xlu0 %v1334, 110
        %v1341 = vpop.permute.xlu0 %1340
        %1342 = vrot.lane.b32.xlu0 %v1335, 110
        %v1343 = vpop.permute.xlu0 %1342
        %1344 = vrot.lane.b32.xlu0 %v1336, 110
        %v1345 = vpop.permute.xlu0 %1344
        %vm1346 = vcmask 900096
        %v1347 = vsel %vm1346, %v1341, %v1343
        %v1348 = vsel %vm1346, %v1343, %v1345
        %1352 = vst [vmem:[#allocation3 + $0x48] sm:$0xff] %v1347
        %1353 = vst [vmem:[#allocation3 + $0x50] sm:$0xff] %v1348
        %1354 = vst.msk [vmem:[#allocation3 + $0x58] sm:$0xff] %vm1290, %v1345
        %v1355 = vld [vmem:[#allocation2] sm:$0xff]
        %v1356 = vld [vmem:[#allocation2 + $0x8] sm:$0xff]
        %v1357 = vld [vmem:[#allocation2 + $0x10] sm:$0xff]
        %1361 = vrot.lane.b32.xlu0 %v1355, 109
        %v1362 = vpop.permute.xlu0 %1361
        %1363 = vrot.lane.b32.xlu0 %v1356, 109
        %v1364 = vpop.permute.xlu0 %1363
        %1365 = vrot.lane.b32.xlu0 %v1357, 109
        %v1366 = vpop.permute.xlu0 %1365
        %vm1367 = vcmask 891904
        %v1368 = vsel %vm1367, %v1362, %v1364
        %v1369 = vsel %vm1367, %v1364, %v1366
        %1373 = vst [vmem:[#allocation3 + $0x60] sm:$0xff] %v1368
        %1374 = vst [vmem:[#allocation3 + $0x68] sm:$0xff] %v1369
        %1375 = vst.msk [vmem:[#allocation3 + $0x70] sm:$0xff] %vm1290, %v1366
        %v1376 = vld [vmem:[#allocation2] sm:$0xff]
        %v1377 = vld [vmem:[#allocation2 + $0x8] sm:$0xff]
        %v1378 = vld [vmem:[#allocation2 + $0x10] sm:$0xff]
        %1382 = vrot.lane.b32.xlu0 %v1376, 108
        %v1383 = vpop.permute.xlu0 %1382
        %1384 = vrot.lane.b32.xlu0 %v1377, 108
        %v1385 = vpop.permute.xlu0 %1384
        %1386 = vrot.lane.b32.xlu0 %v1378, 108
        %v1387 = vpop.permute.xlu0 %1386
        %vm1388 = vcmask 883712
        %v1389 = vsel %vm1388, %v1383, %v1385
        %v1390 = vsel %vm1388, %v1385, %v1387
        %1394 = vst [vmem:[#allocation3 + $0x78] sm:$0xff] %v1389
        %1395 = vst [vmem:[#allocation3 + $0x80] sm:$0xff] %v1390
        %1396 = vst.msk [vmem:[#allocation3 + $0x88] sm:$0xff] %vm1290, %v1387
        %v1397 = vld [vmem:[#allocation2] sm:$0xff]
        %v1398 = vld [vmem:[#allocation2 + $0x8] sm:$0xff]
        %v1399 = vld [vmem:[#allocation2 + $0x10] sm:$0xff]
        %1403 = vrot.lane.b32.xlu0 %v1397, 92
        %v1404 = vpop.permute.xlu0 %1403
        %1405 = vrot.lane.b32.xlu0 %v1398, 92
        %v1406 = vpop.permute.xlu0 %1405
        %1407 = vrot.lane.b32.xlu0 %v1399, 92
        %v1408 = vpop.permute.xlu0 %1407
        %vm1409 = vcmask 752640
        %v1410 = vsel %vm1409, %v1404, %v1406
        %v1411 = vsel %vm1409, %v1406, %v1408
        %1415 = vst [vmem:[#allocation3 + $0x90] sm:$0xff] %v1410
        %1416 = vst [vmem:[#allocation3 + $0x98] sm:$0xff] %v1411
        %1417 = vst.msk [vmem:[#allocation3 + $0xa0] sm:$0xff] %vm1290, %v1408
        %v1418 = vld [vmem:[#allocation2] sm:$0xff]
        %v1419 = vld [vmem:[#allocation2 + $0x8] sm:$0xff]
        %v1420 = vld [vmem:[#allocation2 + $0x10] sm:$0xff]
        %1424 = vrot.lane.b32.xlu0 %v1418, 91
        %v1425 = vpop.permute.xlu0 %1424
        %1426 = vrot.lane.b32.xlu0 %v1419, 91
        %v1427 = vpop.permute.xlu0 %1426
        %1428 = vrot.lane.b32.xlu0 %v1420, 91
        %v1429 = vpop.permute.xlu0 %1428
        %vm1430 = vcmask 744448
        %v1431 = vsel %vm1430, %v1425, %v1427
        %v1432 = vsel %vm1430, %v1427, %v1429
        %1436 = vst [vmem:[#allocation3 + $0xa8] sm:$0xff] %v1431
        %1437 = vst [vmem:[#allocation3 + $0xb0] sm:$0xff] %v1432
        %1438 = vst.msk [vmem:[#allocation3 + $0xb8] sm:$0xff] %vm1290, %v1429
        %v1439 = vld [vmem:[#allocation2] sm:$0xff]
        %v1440 = vld [vmem:[#allocation2 + $0x8] sm:$0xff]
        %v1441 = vld [vmem:[#allocation2 + $0x10] sm:$0xff]
        %1445 = vrot.lane.b32.xlu0 %v1439, 90
        %v1446 = vpop.permute.xlu0 %1445
        %1447 = vrot.lane.b32.xlu0 %v1440, 90
        %v1448 = vpop.permute.xlu0 %1447
        %1449 = vrot.lane.b32.xlu0 %v1441, 90
        %v1450 = vpop.permute.xlu0 %1449
        %vm1451 = vcmask 736256
        %v1452 = vsel %vm1451, %v1446, %v1448
        %v1453 = vsel %vm1451, %v1448, %v1450
        %1457 = vst [vmem:[#allocation3 + $0xc0] sm:$0xff] %v1452
        %1458 = vst [vmem:[#allocation3 + $0xc8] sm:$0xff] %v1453
        %1459 = vst.msk [vmem:[#allocation3 + $0xd0] sm:$0xff] %vm1290, %v1450
        %v1460 = vld [vmem:[#allocation3] sm:$0xff]
        %v1461 = vld [vmem:[#allocation3 + $0x8] sm:$0xff]
        %v1462 = vld [vmem:[#allocation3 + $0x10] sm:$0xff]
        %v1463 = vld [vmem:[#allocation3 + $0x18] sm:$0xff]
        %v1464 = vld [vmem:[#allocation3 + $0x20] sm:$0xff]
        %v1465 = vld [vmem:[#allocation3 + $0x28] sm:$0xff]
        %v1466 = vld [vmem:[#allocation3 + $0x30] sm:$0xff]
        %v1467 = vld [vmem:[#allocation3 + $0x38] sm:$0xff]
        %v1468 = vld [vmem:[#allocation3 + $0x40] sm:$0xff]
        %v1469 = vld [vmem:[#allocation3 + $0x48] sm:$0xff]
        %v1470 = vld [vmem:[#allocation3 + $0x50] sm:$0xff]
        %v1471 = vld [vmem:[#allocation3 + $0x58] sm:$0xff]
        %v1472 = vld [vmem:[#allocation3 + $0x60] sm:$0xff]
        %v1473 = vld [vmem:[#allocation3 + $0x68] sm:$0xff]
        %v1474 = vld [vmem:[#allocation3 + $0x70] sm:$0xff]
        %v1475 = vld [vmem:[#allocation3 + $0x78] sm:$0xff]
        %v1476 = vld [vmem:[#allocation3 + $0x80] sm:$0xff]
        %v1477 = vld [vmem:[#allocation3 + $0x88] sm:$0xff]
        %v1478 = vld [vmem:[#allocation3 + $0x90] sm:$0xff]
        %v1479 = vld [vmem:[#allocation3 + $0x98] sm:$0xff]
        %v1480 = vld [vmem:[#allocation3 + $0xa0] sm:$0xff]
        %v1481 = vld [vmem:[#allocation3 + $0xa8] sm:$0xff]
        %v1482 = vld [vmem:[#allocation3 + $0xb0] sm:$0xff]
        %v1483 = vld [vmem:[#allocation3 + $0xb8] sm:$0xff]
        %v1484 = vld [vmem:[#allocation3 + $0xc0] sm:$0xff]
        %v1485 = vld [vmem:[#allocation3 + $0xc8] sm:$0xff]
        %v1486 = vld [vmem:[#allocation3 + $0xd0] sm:$0xff]
        %v1487 = vpack.c.bf16 %v1463, %v1460
        %v1488 = vpack.c.bf16 %v1464, %v1461
        %v1489 = vpack.c.bf16 %v1465, %v1462
        %v1490 = vpack.c.bf16 %v1469, %v1466
        %v1491 = vpack.c.bf16 %v1470, %v1467
        %v1492 = vpack.c.bf16 %v1471, %v1468
        %v1493 = vpack.c.bf16 %v1475, %v1472
        %v1494 = vpack.c.bf16 %v1476, %v1473
        %v1495 = vpack.c.bf16 %v1477, %v1474
        %v1496 = vpack.c.bf16 %v1481, %v1478
        %v1497 = vpack.c.bf16 %v1482, %v1479
        %v1498 = vpack.c.bf16 %v1483, %v1480
        %v1499 = vpack.c.bf16 %v1484, %v1484
        %v1500 = vpack.c.bf16 %v1485, %v1485
        %v1501 = vpack.c.bf16 %v1486, %v1486
        %v1502 = vld [vmem:[%s445] sm:$0xf]
        %v1503 = vld [vmem:[%s449] sm:$0xff]
        %1505 = vset.pattern.permute.xlu0 0
        %1506 = vperm.xlu0 %1505, %v1503
        %v1507 = vpop.permute.xlu0 %1506
        %vm1509 = vcmask 588800
        %v1511 = vsel %vm1509, %v1502, 0
        %vm1513 = vcmask 1043456
        %v1515 = vsel %vm1513, %v1499, 0
        %v1518 = vsel %vm1513, %v1500, 0
        %v1521 = vsel %vm1513, %v1501, 0
        %1523 = vmatpush.bf16.msra.mxu0 0
        %1524 = vmatpush.bf16.msra.mxu0 0
        %1525 = vmatpush.bf16.msra.mxu0 0
        %1526 = vmatpush.bf16.msra.mxu0 %v1515
        %1527 = vmatpush.bf16.msra.mxu0 %v1496
        %1528 = vmatpush.bf16.msra.mxu0 %v1493
        %1529 = vmatpush.bf16.msra.mxu0 %v1490
        %1530 = vmatpush.bf16.msra.mxu0 %v1487
        %1531 = vmatmul.bf16.gmra.mxu0 %v1511
        %v1532 = vpop.f32.mrf.mxu0
        %v1533 = vadd.f32 %v1507, %v1532
        %v1534 = vpop.f32.mrf.mxu0
        %1535 = vdwg.mxu0
        %1536 = vmatpush.bf16.msra.mxu0 0
        %1537 = vmatpush.bf16.msra.mxu0 0
        %1538 = vmatpush.bf16.msra.mxu0 0
        %1539 = vmatpush.bf16.msra.mxu0 %v1518
        %1540 = vmatpush.bf16.msra.mxu0 %v1497
        %1541 = vmatpush.bf16.msra.mxu0 %v1494
        %1542 = vmatpush.bf16.msra.mxu0 %v1491
        %1543 = vmatpush.bf16.msra.mxu0 %v1488
        %1544 = vmatmul.bf16.gmra.mxu0 %v1511
        %v1545 = vpop.f32.mrf.mxu0
        %v1546 = vadd.f32 %v1507, %v1545
        %v1547 = vpop.f32.mrf.mxu0
        %1548 = vdwg.mxu0
        %1549 = vmatpush.bf16.msra.mxu0 0
        %1550 = vmatpush.bf16.msra.mxu0 0
        %1551 = vmatpush.bf16.msra.mxu0 0
        %1552 = vmatpush.bf16.msra.mxu0 %v1521
        %1553 = vmatpush.bf16.msra.mxu0 %v1498
        %1554 = vmatpush.bf16.msra.mxu0 %v1495
        %1555 = vmatpush.bf16.msra.mxu0 %v1492
        %1556 = vmatpush.bf16.msra.mxu0 %v1489
        %1557 = vmatmul.bf16.gmra.mxu0 %v1511
        %v1558 = vpop.f32.mrf.mxu0
        %v1559 = vadd.f32 %v1507, %v1558
        %v1560 = vpop.f32.mrf.mxu0
        %1561 = vdwg.mxu0
        %v1562 = vld [vmem:[%s441] sm:$0xff]
        %v1563 = vld [vmem:[%s441 + $0x8] sm:$0xff]
        %v1564 = vld [vmem:[%s441 + $0x10] sm:$0xff]
        %1568 = vrot.lane.b32.xlu0 %v1562, 109
        %v1569 = vpop.permute.xlu0 %1568
        %1570 = vrot.lane.b32.xlu0 %v1563, 109
        %v1571 = vpop.permute.xlu0 %1570
        %1572 = vrot.lane.b32.xlu0 %v1564, 109
        %v1573 = vpop.permute.xlu0 %1572
        %v1574 = vsel %vm1367, %v1569, %v1571
        %v1575 = vsel %vm1367, %v1571, %v1573
        %v1579 = vadd.f32 %v1533, %v1574
        %v1580 = vadd.f32 %v1546, %v1575
        %v1581 = vadd.f32 %v1559, %v1573
        %v1582 = vmul.f32 %v1579, %v591
        %v1583 = vmul.f32 %v1580, %v592
        %v1584 = vmul.f32 %v1581, %v593
        %1585 = vst [vmem:[%s477] sm:$0xff] %v1582
        %1586 = vst [vmem:[%s477 + $0x8] sm:$0xff] %v1583
        %1587 = vst.msk [vmem:[%s477 + $0x10] sm:$0xff] %vm1290, %v1584
      $region68: #{residual_group_forward.1} parent=55 // pred_fallthru
        _
      %p1588 = scmp.lt.s32.totalorder %s24, 1
      %s1589 = scalar_select %p1588, %s24, 1
      %s1590 = smul.addr %s1589, 3
      %s1591 = smul.addr %s1590, 8
      %s1592 = scalar_lea.vmem %s9, %s1591
      // Predicated region
      $region69: #{residual_group_forward.1} parent=55 // pred_check
        %p1593 = pneg %p284
      $region70: #{residual_group_forward.1} parent=55 // pred_check_branch
        %1595 = sbr.rel (%p1593) target = $region72
      $region71: #{residual_group_forward.1} parent=55 // pred_region
        _
      $region72: #{residual_group_forward.1} parent=55 // pred_fallthru
        _
    $region56: #{residual_group_forward.1} parent=5 // pred_fallthru
      _
    %p1596 = scmp.le.s32.totalorder 2, %s15
    // Predicated region
    $region73: #{residual_group_forward.1} parent=5 // pred_check
      %p1597 = pneg %p1596
    $region74: #{residual_group_forward.1} parent=5 // pred_check_branch
      %1599 = sbr.rel (%p1597) target = $region76
    $region75: #{residual_group_forward.1} parent=5 // pred_region
      %s1600 = ssub.s32 %s15, 2
      // Predicated region
      $region77: #{residual_group_forward.1} parent=75 // pred_check
        %p1601 = pneg %p290
      $region78: #{residual_group_forward.1} parent=75 // pred_check_branch
        %1603 = sbr.rel (%p1601) target = $region80
      $region79: #{residual_group_forward.1} parent=75 // pred_region
        %p1604 = scmp.lt.s32.totalorder %s26, 1
        %s1605 = scalar_select %p1604, %s26, 1
        %s1606 = smul.addr %s1605, 3
        %s1607 = smul.addr %s1606, 8
        %s1608 = scalar_lea.vmem %s9, %s1607
      $region80: #{residual_group_forward.1} parent=75 // pred_fallthru
        _
    $region76: #{residual_group_forward.1} parent=5 // pred_fallthru
      _
  $region6: #{residual_group_forward.1} parent=0 // loop_footer
    %s19 = sadd.s32 1, %s15
  $region7: #{residual_group_forward.1} parent=0 // loop_footer_branch
    %14 = sbr.rel target = $region3
  $region8: #{residual_group_forward.1} parent=0 // loop_exit
    _

</llo_original>
